<compile_context>
chip_gen: v6e
topology: v6e:2x2x1
jax: 0.10.0
libtpu: 0.0.40
codegen_flags: <defaults>
</compile_context>

<pallas_src>
import functools

import jax
import jax.numpy as jnp
from jax.experimental import pallas as pl
from jax.experimental.pallas import tpu as pltpu


def _speech_encoder_bottom_kernel(x_ref, w_col_ref, b_conv_ref,
                                  w_ih3_ref, b_gates_ref,
                                  w_hh3_ref, b_hhn_ref,
                                  out_ref, *, filter_length, stride):
    T_pad, Bb, Cin = x_ref.shape            # time-major input block
    _, T_out, H = out_ref.shape             # output is batch-major (Bb, T_out, H)
    Cout = w_col_ref.shape[2]
    L, S = filter_length, stride
    H3 = 3 * H

    # ---- Conv1d (length L, stride S, no padding) as L accumulated matmuls ----
    # Regroup time so every stride-S tap is a contiguous leading-axis slice;
    # no lane-axis concat, every matmul operand keeps its natural layout.
    x = x_ref[...].astype(jnp.bfloat16)                         # (T_pad, Bb, Cin)
    xr = x.reshape(T_pad // S, S, Bb, Cin)                      # xr[p, j] = x[S*p + j]
    conv = jnp.zeros((T_out * Bb, Cout), jnp.float32)
    for k in range(L):                                          # prologue, pipelines freely
        tap = xr[(k // S):(k // S) + T_out, k % S]              # (T_out, Bb, Cin) bf16
        conv = conv + jnp.dot(tap.reshape(T_out * Bb, Cin),     # bf16 x bf16 -> f32 acc
                              w_col_ref[k],
                              preferred_element_type=jnp.float32)
    conv = conv + b_conv_ref[...]                               # (T_out*Bb, Cout) f32

    # Dropout(p=0.0) is the identity.

    # ---- Hoisted GRU input-gate projections, gates (r|z|n) stacked on lanes ---
    gx = jnp.dot(conv.astype(jnp.bfloat16), w_ih3_ref[...],
                 preferred_element_type=jnp.float32) + b_gates_ref[...]
    gx3 = gx.reshape(T_out, Bb, H3)         # per-step access = free tile select

    # ---- GRU recurrence: one fused f32 (Bb,H)@(H,3H) matmul per step ----------
    w_hh3 = w_hh3_ref[...]                                      # (H, 3H) f32
    b_hhn = jnp.broadcast_to(b_hhn_ref[...], (Bb, H))           # hoisted broadcast

    h = jnp.zeros((Bb, H), jnp.float32)
    outs = []
    for t in range(T_out):                                      # fully unrolled (static T_out)
        gx_t = gx3[t]                                           # (Bb, 3H)
        gh = jnp.dot(h, w_hh3, preferred_element_type=jnp.float32)      # (Bb, 3H)
        rz = jax.nn.sigmoid(gx_t[:, :2 * H] + gh[:, :2 * H])    # fused r|z sigmoid
        r = rz[:, :H]
        z = rz[:, H:]
        n = jnp.tanh(gx_t[:, 2 * H:] + r * (gh[:, 2 * H:] + b_hhn))
        h = (1.0 - z) * n + z * h
        outs.append(h)

    # Single relayout + one full-block, lane-dense store (no per-step stores).
    out_ref[...] = jnp.stack(outs, axis=1)                      # (Bb, T_out, H)


def speech_encoder_bottom_forward(x, params, *, filter_length=6, stride=2):
    """x: (B, T, size_vocab) f32  ->  (B, T_out, size) f32 GRU output sequence."""
    B, T, Cin = x.shape
    Wc = params["conv_w"]            # (Cout, Cin, L)   PyTorch Conv1d layout
    bc = params["conv_b"]            # (Cout,)
    w_ih = params["w_ih"]            # (3H, Cout)       PyTorch GRU weight_ih_l0 (r,z,n)
    w_hh = params["w_hh"]            # (3H, H)
    b_ih = params["b_ih"]            # (3H,)
    b_hh = params["b_hh"]            # (3H,)
    Cout, _, L = Wc.shape
    H = w_hh.shape[1]
    S = stride
    assert L == filter_length and T >= L
    T_out = (T - L) // S + 1

    # Kernel-side weight layouts (x @ W convention, gates stacked on lanes).
    # MXU operands of the hoisted matmuls are bf16; recurrent weights stay f32.
    w_col = jnp.transpose(Wc, (2, 1, 0)).astype(jnp.bfloat16)          # (L, Cin, Cout)
    b_conv = bc.reshape(1, Cout).astype(jnp.float32)
    w_ih3 = w_ih.T.astype(jnp.bfloat16)                                # (Cout, 3H)
    w_hh3 = w_hh.T.astype(jnp.float32)                                 # (H, 3H)
    # Pre-sum r/z biases (b_ih + b_hh); n keeps b_hh_n inside the r*(...) term.
    b_gates = jnp.concatenate([b_ih[:H] + b_hh[:H],
                               b_ih[H:2 * H] + b_hh[H:2 * H],
                               b_ih[2 * H:]]).reshape(1, 3 * H).astype(jnp.float32)
    b_hhn = b_hh[2 * H:].reshape(1, H).astype(jnp.float32)

    # Time-major layout for the recurrence; pad T to a multiple of the stride
    # so the conv taps are extractable with a free reshape (padding is unused).
    x_tbc = jnp.transpose(x, (1, 0, 2)).astype(jnp.float32)            # (T, B, Cin)
    T_pad = ((T + S - 1) // S) * S
    if T_pad != T:
        x_tbc = jnp.pad(x_tbc, ((0, T_pad - T), (0, 0), (0, 0)))

    # Batch block: whole batch per grid step when small (v5e/v6e: one TC, fewer
    # grid steps, larger M for the hoisted matmuls).  For large B pick a
    # multiple-of-8 divisor so several blocks exist — the "parallel" grid axis
    # then shards them across both TensorCores on v7x.
    if B <= 64:
        bb = B
    else:
        bb = max((d for d in range(8, 65, 8) if B % d == 0), default=B)
    grid = (B // bb,)
    # VMEM footprint at these shapes is a few tens of KiB; no vmem_limit_bytes
    # override needed (re-derive against 64 MiB physical if T/B scale up on v7x).

    kernel = functools.partial(_speech_encoder_bottom_kernel,
                               filter_length=L, stride=S)

    def full_spec(a):
        return pl.BlockSpec(a.shape, lambda i: (0,) * a.ndim)

    out = pl.pallas_call(
        kernel,
        out_shape=jax.ShapeDtypeStruct((B, T_out, H), jnp.float32),
        grid=grid,
        in_specs=[pl.BlockSpec((T_pad, bb, Cin), lambda i: (0, i, 0)),
                  full_spec(w_col), full_spec(b_conv),
                  full_spec(w_ih3), full_spec(b_gates),
                  full_spec(w_hh3), full_spec(b_hhn)],
        out_specs=pl.BlockSpec((bb, T_out, H), lambda i: (i, 0, 0)),
        compiler_params=pltpu.CompilerParams(
            dimension_semantics=("parallel",)),
    )(x_tbc, w_col, b_conv, w_ih3, b_gates, w_hh3, b_hhn)

    return out                                                          # (B, T_out, H)


def init_params(key, Cin, Cout, H, L):
    ks = jax.random.split(key, 6)
    s = 0.1
    return {
        "conv_w": jax.random.normal(ks[0], (Cout, Cin, L), jnp.float32) * s,
        "conv_b": jax.random.normal(ks[1], (Cout,), jnp.float32) * s,
        "w_ih":   jax.random.normal(ks[2], (3 * H, Cout), jnp.float32) * s,
        "w_hh":   jax.random.normal(ks[3], (3 * H, H), jnp.float32) * s,
        "b_ih":   jax.random.normal(ks[4], (3 * H,), jnp.float32) * s,
        "b_hh":   jax.random.normal(ks[5], (3 * H,), jnp.float32) * s,
    }


def reference_forward(x, params, *, stride=2):
    """Pure-JAX (all-f32) mirror of the PyTorch forward pass, for verification."""
    Wc, bc = params["conv_w"], params["conv_b"]
    w_ih, w_hh = params["w_ih"], params["w_hh"]
    b_ih, b_hh = params["b_ih"], params["b_hh"]
    B, T, Cin = x.shape
    Cout, _, L = Wc.shape
    H = w_hh.shape[1]
    S = stride
    T_out = (T - L) // S + 1

    # nn.Conv1d (no padding), batch_first layout.
    conv = jnp.stack([jnp.einsum("bkc,ock->bo", x[:, t * S:t * S + L, :], Wc) + bc
                      for t in range(T_out)], axis=1)                  # (B, T_out, Cout)

    # nn.GRU, gate order (r, z, n), h0 = zeros.
    W_ir, W_iz, W_in = w_ih[:H], w_ih[H:2 * H], w_ih[2 * H:]
    W_hr, W_hz, W_hn = w_hh[:H], w_hh[H:2 * H], w_hh[2 * H:]
    b_ir, b_iz, b_in = b_ih[:H], b_ih[H:2 * H], b_ih[2 * H:]
    b_hr, b_hz, b_hn = b_hh[:H], b_hh[H:2 * H], b_hh[2 * H:]
    h = jnp.zeros((B, H), jnp.float32)
    outs = []
    for t in range(T_out):
        xt = conv[:, t, :]
        r = jax.nn.sigmoid(xt @ W_ir.T + b_ir + h @ W_hr.T + b_hr)
        z = jax.nn.sigmoid(xt @ W_iz.T + b_iz + h @ W_hz.T + b_hz)
        n = jnp.tanh(xt @ W_in.T + b_in + r * (h @ W_hn.T + b_hn))
        h = (1.0 - z) * n + z * h
        outs.append(h)
    return jnp.stack(outs, axis=1)                                     # (B, T_out, H)


if __name__ == "__main__":
    # SpeechEncoderBottom(size_vocab=13, size=32, depth=1, filter_length=6,
    #                     filter_size=64, stride=2), batch=2, seq=20.
    B, T, Cin, Cout, H, L, S = 2, 20, 13, 64, 32, 6, 2
    key = jax.random.PRNGKey(0)
    kp, kx = jax.random.split(key)
    params = init_params(kp, Cin, Cout, H, L)
    x = jax.random.normal(kx, (B, T, Cin), jnp.float32)

    out = speech_encoder_bottom_forward(x, params, filter_length=L, stride=S)
    out = jax.block_until_ready(out)

    ref = reference_forward(x, params, stride=S)
    T_out = (T - L) // S + 1
    assert out.shape == (B, T_out, H)
    # bf16 MXU operands on the hoisted conv / input-gate matmuls (recurrence is
    # f32) => small absolute error vs. the all-f32 reference.
    err = float(jnp.max(jnp.abs(out - ref)))
    assert jnp.allclose(out, ref, rtol=2e-2, atol=2e-2), err
    print("KERNEL_OK")
</pallas_src>

<mosaic_0001>
module attributes {stable_mosaic.version = 11 : i64} {
  func.func @_speech_encoder_bottom_kernel(%arg0: i32, %arg1: memref<20x2x13xf32, #tpu.memory_space<vmem>>, %arg2: memref<6x13x64xbf16, #tpu.memory_space<vmem>>, %arg3: memref<1x64xf32, #tpu.memory_space<vmem>>, %arg4: memref<64x96xbf16, #tpu.memory_space<vmem>>, %arg5: memref<1x96xf32, #tpu.memory_space<vmem>>, %arg6: memref<32x96xf32, #tpu.memory_space<vmem>>, %arg7: memref<1x32xf32, #tpu.memory_space<vmem>>, %arg8: memref<2x8x32xf32, #tpu.memory_space<vmem>>) attributes {dimension_semantics = [#tpu.dimension_semantics<parallel>], iteration_bounds = array<i64: 1>, scalar_prefetch = 0 : i64, scratch_operands = 0 : i64, tpu.core_type = #tpu.core_type<tc>, window_params = [{transform_indices = @transform_0, window_bounds = array<i64: 20, 2, 13>}, {pipeline_mode = #tpu.pipeline_mode<synchronous>, transform_indices = @transform_1, window_bounds = array<i64: 6, 13, 64>}, {pipeline_mode = #tpu.pipeline_mode<synchronous>, transform_indices = @transform_2, window_bounds = array<i64: 1, 64>}, {pipeline_mode = #tpu.pipeline_mode<synchronous>, transform_indices = @transform_3, window_bounds = array<i64: 64, 96>}, {pipeline_mode = #tpu.pipeline_mode<synchronous>, transform_indices = @transform_4, window_bounds = array<i64: 1, 96>}, {pipeline_mode = #tpu.pipeline_mode<synchronous>, transform_indices = @transform_5, window_bounds = array<i64: 32, 96>}, {pipeline_mode = #tpu.pipeline_mode<synchronous>, transform_indices = @transform_6, window_bounds = array<i64: 1, 32>}, {transform_indices = @transform_7, window_bounds = array<i64: 2, 8, 32>}]} {
    %c0 = arith.constant 0 : index
    %c0_0 = arith.constant 0 : index
    %c0_1 = arith.constant 0 : index
    %0 = vector.load %arg1[%c0, %c0_0, %c0_1] : memref<20x2x13xf32, #tpu.memory_space<vmem>>, vector<20x2x13xf32>
    %1 = arith.truncf %0 : vector<20x2x13xf32> to vector<20x2x13xbf16>
    %2 = vector.shape_cast %1 : vector<20x2x13xbf16> to vector<10x2x2x13xbf16>
    %cst = arith.constant 0.000000e+00 : f32
    %3 = vector.broadcast %cst : f32 to vector<16x64xf32>
    %4 = vector.extract_strided_slice %2 {offsets = [0, 0, 0, 0], sizes = [8, 1, 2, 13], strides = [1, 1, 1, 1]} : vector<10x2x2x13xbf16> to vector<8x1x2x13xbf16>
    %5 = vector.shape_cast %4 : vector<8x1x2x13xbf16> to vector<8x2x13xbf16>
    %6 = vector.shape_cast %5 : vector<8x2x13xbf16> to vector<16x13xbf16>
    %c0_2 = arith.constant 0 : index
    %c0_3 = arith.constant 0 : index
    %c0_4 = arith.constant 0 : index
    %7 = vector.load %arg2[%c0_2, %c0_3, %c0_4] : memref<6x13x64xbf16, #tpu.memory_space<vmem>>, vector<1x13x64xbf16>
    %8 = vector.shape_cast %7 : vector<1x13x64xbf16> to vector<13x64xbf16>
    %cst_5 = arith.constant dense<0.000000e+00> : vector<16x64xf32>
    %9 = tpu.matmul %6, %8, %cst_5 {dimension_numbers = #tpu.dot_dimension_numbers<[1], [0], [0], [1], [0, 0, 1, 1], [], []>} : vector<16x13xbf16>, vector<13x64xbf16>, vector<16x64xf32> -> vector<16x64xf32>
    %10 = arith.addf %3, %9 : vector<16x64xf32>
    %11 = vector.extract_strided_slice %2 {offsets = [0, 1, 0, 0], sizes = [8, 1, 2, 13], strides = [1, 1, 1, 1]} : vector<10x2x2x13xbf16> to vector<8x1x2x13xbf16>
    %12 = vector.shape_cast %11 : vector<8x1x2x13xbf16> to vector<8x2x13xbf16>
    %13 = vector.shape_cast %12 : vector<8x2x13xbf16> to vector<16x13xbf16>
    %c1 = arith.constant 1 : index
    %c0_6 = arith.constant 0 : index
    %c0_7 = arith.constant 0 : index
    %14 = vector.load %arg2[%c1, %c0_6, %c0_7] : memref<6x13x64xbf16, #tpu.memory_space<vmem>>, vector<1x13x64xbf16>
    %15 = vector.shape_cast %14 : vector<1x13x64xbf16> to vector<13x64xbf16>
    %cst_8 = arith.constant dense<0.000000e+00> : vector<16x64xf32>
    %16 = tpu.matmul %13, %15, %cst_8 {dimension_numbers = #tpu.dot_dimension_numbers<[1], [0], [0], [1], [0, 0, 1, 1], [], []>} : vector<16x13xbf16>, vector<13x64xbf16>, vector<16x64xf32> -> vector<16x64xf32>
    %17 = arith.addf %10, %16 : vector<16x64xf32>
    %18 = vector.extract_strided_slice %2 {offsets = [1, 0, 0, 0], sizes = [8, 1, 2, 13], strides = [1, 1, 1, 1]} : vector<10x2x2x13xbf16> to vector<8x1x2x13xbf16>
    %19 = vector.shape_cast %18 : vector<8x1x2x13xbf16> to vector<8x2x13xbf16>
    %20 = vector.shape_cast %19 : vector<8x2x13xbf16> to vector<16x13xbf16>
    %c2 = arith.constant 2 : index
    %c0_9 = arith.constant 0 : index
    %c0_10 = arith.constant 0 : index
    %21 = vector.load %arg2[%c2, %c0_9, %c0_10] : memref<6x13x64xbf16, #tpu.memory_space<vmem>>, vector<1x13x64xbf16>
    %22 = vector.shape_cast %21 : vector<1x13x64xbf16> to vector<13x64xbf16>
    %cst_11 = arith.constant dense<0.000000e+00> : vector<16x64xf32>
    %23 = tpu.matmul %20, %22, %cst_11 {dimension_numbers = #tpu.dot_dimension_numbers<[1], [0], [0], [1], [0, 0, 1, 1], [], []>} : vector<16x13xbf16>, vector<13x64xbf16>, vector<16x64xf32> -> vector<16x64xf32>
    %24 = arith.addf %17, %23 : vector<16x64xf32>
    %25 = vector.extract_strided_slice %2 {offsets = [1, 1, 0, 0], sizes = [8, 1, 2, 13], strides = [1, 1, 1, 1]} : vector<10x2x2x13xbf16> to vector<8x1x2x13xbf16>
    %26 = vector.shape_cast %25 : vector<8x1x2x13xbf16> to vector<8x2x13xbf16>
    %27 = vector.shape_cast %26 : vector<8x2x13xbf16> to vector<16x13xbf16>
    %c3 = arith.constant 3 : index
    %c0_12 = arith.constant 0 : index
    %c0_13 = arith.constant 0 : index
    %28 = vector.load %arg2[%c3, %c0_12, %c0_13] : memref<6x13x64xbf16, #tpu.memory_space<vmem>>, vector<1x13x64xbf16>
    %29 = vector.shape_cast %28 : vector<1x13x64xbf16> to vector<13x64xbf16>
    %cst_14 = arith.constant dense<0.000000e+00> : vector<16x64xf32>
    %30 = tpu.matmul %27, %29, %cst_14 {dimension_numbers = #tpu.dot_dimension_numbers<[1], [0], [0], [1], [0, 0, 1, 1], [], []>} : vector<16x13xbf16>, vector<13x64xbf16>, vector<16x64xf32> -> vector<16x64xf32>
    %31 = arith.addf %24, %30 : vector<16x64xf32>
    %32 = vector.extract_strided_slice %2 {offsets = [2, 0, 0, 0], sizes = [8, 1, 2, 13], strides = [1, 1, 1, 1]} : vector<10x2x2x13xbf16> to vector<8x1x2x13xbf16>
    %33 = vector.shape_cast %32 : vector<8x1x2x13xbf16> to vector<8x2x13xbf16>
    %34 = vector.shape_cast %33 : vector<8x2x13xbf16> to vector<16x13xbf16>
    %c4 = arith.constant 4 : index
    %c0_15 = arith.constant 0 : index
    %c0_16 = arith.constant 0 : index
    %35 = vector.load %arg2[%c4, %c0_15, %c0_16] : memref<6x13x64xbf16, #tpu.memory_space<vmem>>, vector<1x13x64xbf16>
    %36 = vector.shape_cast %35 : vector<1x13x64xbf16> to vector<13x64xbf16>
    %cst_17 = arith.constant dense<0.000000e+00> : vector<16x64xf32>
    %37 = tpu.matmul %34, %36, %cst_17 {dimension_numbers = #tpu.dot_dimension_numbers<[1], [0], [0], [1], [0, 0, 1, 1], [], []>} : vector<16x13xbf16>, vector<13x64xbf16>, vector<16x64xf32> -> vector<16x64xf32>
    %38 = arith.addf %31, %37 : vector<16x64xf32>
    %39 = vector.extract_strided_slice %2 {offsets = [2, 1, 0, 0], sizes = [8, 1, 2, 13], strides = [1, 1, 1, 1]} : vector<10x2x2x13xbf16> to vector<8x1x2x13xbf16>
    %40 = vector.shape_cast %39 : vector<8x1x2x13xbf16> to vector<8x2x13xbf16>
    %41 = vector.shape_cast %40 : vector<8x2x13xbf16> to vector<16x13xbf16>
    %c5 = arith.constant 5 : index
    %c0_18 = arith.constant 0 : index
    %c0_19 = arith.constant 0 : index
    %42 = vector.load %arg2[%c5, %c0_18, %c0_19] : memref<6x13x64xbf16, #tpu.memory_space<vmem>>, vector<1x13x64xbf16>
    %43 = vector.shape_cast %42 : vector<1x13x64xbf16> to vector<13x64xbf16>
    %cst_20 = arith.constant dense<0.000000e+00> : vector<16x64xf32>
    %44 = tpu.matmul %41, %43, %cst_20 {dimension_numbers = #tpu.dot_dimension_numbers<[1], [0], [0], [1], [0, 0, 1, 1], [], []>} : vector<16x13xbf16>, vector<13x64xbf16>, vector<16x64xf32> -> vector<16x64xf32>
    %45 = arith.addf %38, %44 : vector<16x64xf32>
    %c0_21 = arith.constant 0 : index
    %c0_22 = arith.constant 0 : index
    %46 = vector.load %arg3[%c0_21, %c0_22] : memref<1x64xf32, #tpu.memory_space<vmem>>, vector<1x64xf32>
    %47 = vector.broadcast %46 : vector<1x64xf32> to vector<16x64xf32>
    %48 = arith.addf %45, %47 : vector<16x64xf32>
    %49 = arith.truncf %48 : vector<16x64xf32> to vector<16x64xbf16>
    %c0_23 = arith.constant 0 : index
    %c0_24 = arith.constant 0 : index
    %50 = vector.load %arg4[%c0_23, %c0_24] : memref<64x96xbf16, #tpu.memory_space<vmem>>, vector<64x96xbf16>
    %cst_25 = arith.constant dense<0.000000e+00> : vector<16x96xf32>
    %51 = tpu.matmul %49, %50, %cst_25 {dimension_numbers = #tpu.dot_dimension_numbers<[1], [0], [0], [1], [0, 0, 1, 1], [], []>} : vector<16x64xbf16>, vector<64x96xbf16>, vector<16x96xf32> -> vector<16x96xf32>
    %c0_26 = arith.constant 0 : index
    %c0_27 = arith.constant 0 : index
    %52 = vector.load %arg5[%c0_26, %c0_27] : memref<1x96xf32, #tpu.memory_space<vmem>>, vector<1x96xf32>
    %53 = vector.broadcast %52 : vector<1x96xf32> to vector<16x96xf32>
    %54 = arith.addf %51, %53 : vector<16x96xf32>
    %55 = vector.shape_cast %54 : vector<16x96xf32> to vector<8x2x96xf32>
    %c0_28 = arith.constant 0 : index
    %c0_29 = arith.constant 0 : index
    %56 = vector.load %arg6[%c0_28, %c0_29] : memref<32x96xf32, #tpu.memory_space<vmem>>, vector<32x96xf32>
    %c0_30 = arith.constant 0 : index
    %c0_31 = arith.constant 0 : index
    %57 = vector.load %arg7[%c0_30, %c0_31] : memref<1x32xf32, #tpu.memory_space<vmem>>, vector<1x32xf32>
    %58 = vector.shape_cast %57 : vector<1x32xf32> to vector<1x32xf32>
    %59 = vector.broadcast %58 : vector<1x32xf32> to vector<2x32xf32>
    %cst_32 = arith.constant 0.000000e+00 : f32
    %60 = vector.broadcast %cst_32 : f32 to vector<2x32xf32>
    %61 = vector.extract_strided_slice %55 {offsets = [0, 0, 0], sizes = [1, 2, 96], strides = [1, 1, 1]} : vector<8x2x96xf32> to vector<1x2x96xf32>
    %62 = vector.shape_cast %61 : vector<1x2x96xf32> to vector<2x96xf32>
    %cst_33 = arith.constant dense<0.000000e+00> : vector<2x96xf32>
    %63 = tpu.matmul %60, %56, %cst_33 {dimension_numbers = #tpu.dot_dimension_numbers<[1], [0], [0], [1], [0, 0, 1, 1], [], []>} : vector<2x32xf32>, vector<32x96xf32>, vector<2x96xf32> -> vector<2x96xf32>
    %64 = vector.extract_strided_slice %62 {offsets = [0, 0], sizes = [2, 64], strides = [1, 1]} : vector<2x96xf32> to vector<2x64xf32>
    %65 = vector.extract_strided_slice %63 {offsets = [0, 0], sizes = [2, 64], strides = [1, 1]} : vector<2x96xf32> to vector<2x64xf32>
    %66 = arith.addf %64, %65 : vector<2x64xf32>
    %67 = arith.negf %66 : vector<2x64xf32>
    %68 = math.exp %67 : vector<2x64xf32>
    %cst_34 = arith.constant 1.000000e+00 : f32
    %69 = vector.broadcast %cst_34 : f32 to vector<2x64xf32>
    %70 = arith.addf %69, %68 : vector<2x64xf32>
    %71 = arith.divf %69, %70 : vector<2x64xf32>
    %72 = vector.extract_strided_slice %71 {offsets = [0, 0], sizes = [2, 32], strides = [1, 1]} : vector<2x64xf32> to vector<2x32xf32>
    %73 = vector.extract_strided_slice %71 {offsets = [0, 32], sizes = [2, 32], strides = [1, 1]} : vector<2x64xf32> to vector<2x32xf32>
    %74 = vector.extract_strided_slice %62 {offsets = [0, 64], sizes = [2, 32], strides = [1, 1]} : vector<2x96xf32> to vector<2x32xf32>
    %75 = vector.extract_strided_slice %63 {offsets = [0, 64], sizes = [2, 32], strides = [1, 1]} : vector<2x96xf32> to vector<2x32xf32>
    %76 = arith.addf %75, %59 : vector<2x32xf32>
    %77 = arith.mulf %72, %76 : vector<2x32xf32>
    %78 = arith.addf %74, %77 : vector<2x32xf32>
    %79 = math.tanh %78 : vector<2x32xf32>
    %cst_35 = arith.constant 1.000000e+00 : f32
    %80 = vector.broadcast %cst_35 : f32 to vector<2x32xf32>
    %81 = arith.subf %80, %73 : vector<2x32xf32>
    %82 = arith.mulf %81, %79 : vector<2x32xf32>
    %83 = arith.mulf %73, %60 : vector<2x32xf32>
    %84 = arith.addf %82, %83 : vector<2x32xf32>
    %85 = vector.extract_strided_slice %55 {offsets = [1, 0, 0], sizes = [1, 2, 96], strides = [1, 1, 1]} : vector<8x2x96xf32> to vector<1x2x96xf32>
    %86 = vector.shape_cast %85 : vector<1x2x96xf32> to vector<2x96xf32>
    %cst_36 = arith.constant dense<0.000000e+00> : vector<2x96xf32>
    %87 = tpu.matmul %84, %56, %cst_36 {dimension_numbers = #tpu.dot_dimension_numbers<[1], [0], [0], [1], [0, 0, 1, 1], [], []>} : vector<2x32xf32>, vector<32x96xf32>, vector<2x96xf32> -> vector<2x96xf32>
    %88 = vector.extract_strided_slice %86 {offsets = [0, 0], sizes = [2, 64], strides = [1, 1]} : vector<2x96xf32> to vector<2x64xf32>
    %89 = vector.extract_strided_slice %87 {offsets = [0, 0], sizes = [2, 64], strides = [1, 1]} : vector<2x96xf32> to vector<2x64xf32>
    %90 = arith.addf %88, %89 : vector<2x64xf32>
    %91 = arith.negf %90 : vector<2x64xf32>
    %92 = math.exp %91 : vector<2x64xf32>
    %cst_37 = arith.constant 1.000000e+00 : f32
    %93 = vector.broadcast %cst_37 : f32 to vector<2x64xf32>
    %94 = arith.addf %93, %92 : vector<2x64xf32>
    %95 = arith.divf %93, %94 : vector<2x64xf32>
    %96 = vector.extract_strided_slice %95 {offsets = [0, 0], sizes = [2, 32], strides = [1, 1]} : vector<2x64xf32> to vector<2x32xf32>
    %97 = vector.extract_strided_slice %95 {offsets = [0, 32], sizes = [2, 32], strides = [1, 1]} : vector<2x64xf32> to vector<2x32xf32>
    %98 = vector.extract_strided_slice %86 {offsets = [0, 64], sizes = [2, 32], strides = [1, 1]} : vector<2x96xf32> to vector<2x32xf32>
    %99 = vector.extract_strided_slice %87 {offsets = [0, 64], sizes = [2, 32], strides = [1, 1]} : vector<2x96xf32> to vector<2x32xf32>
    %100 = arith.addf %99, %59 : vector<2x32xf32>
    %101 = arith.mulf %96, %100 : vector<2x32xf32>
    %102 = arith.addf %98, %101 : vector<2x32xf32>
    %103 = math.tanh %102 : vector<2x32xf32>
    %cst_38 = arith.constant 1.000000e+00 : f32
    %104 = vector.broadcast %cst_38 : f32 to vector<2x32xf32>
    %105 = arith.subf %104, %97 : vector<2x32xf32>
    %106 = arith.mulf %105, %103 : vector<2x32xf32>
    %107 = arith.mulf %97, %84 : vector<2x32xf32>
    %108 = arith.addf %106, %107 : vector<2x32xf32>
    %109 = vector.extract_strided_slice %55 {offsets = [2, 0, 0], sizes = [1, 2, 96], strides = [1, 1, 1]} : vector<8x2x96xf32> to vector<1x2x96xf32>
    %110 = vector.shape_cast %109 : vector<1x2x96xf32> to vector<2x96xf32>
    %cst_39 = arith.constant dense<0.000000e+00> : vector<2x96xf32>
    %111 = tpu.matmul %108, %56, %cst_39 {dimension_numbers = #tpu.dot_dimension_numbers<[1], [0], [0], [1], [0, 0, 1, 1], [], []>} : vector<2x32xf32>, vector<32x96xf32>, vector<2x96xf32> -> vector<2x96xf32>
    %112 = vector.extract_strided_slice %110 {offsets = [0, 0], sizes = [2, 64], strides = [1, 1]} : vector<2x96xf32> to vector<2x64xf32>
    %113 = vector.extract_strided_slice %111 {offsets = [0, 0], sizes = [2, 64], strides = [1, 1]} : vector<2x96xf32> to vector<2x64xf32>
    %114 = arith.addf %112, %113 : vector<2x64xf32>
    %115 = arith.negf %114 : vector<2x64xf32>
    %116 = math.exp %115 : vector<2x64xf32>
    %cst_40 = arith.constant 1.000000e+00 : f32
    %117 = vector.broadcast %cst_40 : f32 to vector<2x64xf32>
    %118 = arith.addf %117, %116 : vector<2x64xf32>
    %119 = arith.divf %117, %118 : vector<2x64xf32>
    %120 = vector.extract_strided_slice %119 {offsets = [0, 0], sizes = [2, 32], strides = [1, 1]} : vector<2x64xf32> to vector<2x32xf32>
    %121 = vector.extract_strided_slice %119 {offsets = [0, 32], sizes = [2, 32], strides = [1, 1]} : vector<2x64xf32> to vector<2x32xf32>
    %122 = vector.extract_strided_slice %110 {offsets = [0, 64], sizes = [2, 32], strides = [1, 1]} : vector<2x96xf32> to vector<2x32xf32>
    %123 = vector.extract_strided_slice %111 {offsets = [0, 64], sizes = [2, 32], strides = [1, 1]} : vector<2x96xf32> to vector<2x32xf32>
    %124 = arith.addf %123, %59 : vector<2x32xf32>
    %125 = arith.mulf %120, %124 : vector<2x32xf32>
    %126 = arith.addf %122, %125 : vector<2x32xf32>
    %127 = math.tanh %126 : vector<2x32xf32>
    %cst_41 = arith.constant 1.000000e+00 : f32
    %128 = vector.broadcast %cst_41 : f32 to vector<2x32xf32>
    %129 = arith.subf %128, %121 : vector<2x32xf32>
    %130 = arith.mulf %129, %127 : vector<2x32xf32>
    %131 = arith.mulf %121, %108 : vector<2x32xf32>
    %132 = arith.addf %130, %131 : vector<2x32xf32>
    %133 = vector.extract_strided_slice %55 {offsets = [3, 0, 0], sizes = [1, 2, 96], strides = [1, 1, 1]} : vector<8x2x96xf32> to vector<1x2x96xf32>
    %134 = vector.shape_cast %133 : vector<1x2x96xf32> to vector<2x96xf32>
    %cst_42 = arith.constant dense<0.000000e+00> : vector<2x96xf32>
    %135 = tpu.matmul %132, %56, %cst_42 {dimension_numbers = #tpu.dot_dimension_numbers<[1], [0], [0], [1], [0, 0, 1, 1], [], []>} : vector<2x32xf32>, vector<32x96xf32>, vector<2x96xf32> -> vector<2x96xf32>
    %136 = vector.extract_strided_slice %134 {offsets = [0, 0], sizes = [2, 64], strides = [1, 1]} : vector<2x96xf32> to vector<2x64xf32>
    %137 = vector.extract_strided_slice %135 {offsets = [0, 0], sizes = [2, 64], strides = [1, 1]} : vector<2x96xf32> to vector<2x64xf32>
    %138 = arith.addf %136, %137 : vector<2x64xf32>
    %139 = arith.negf %138 : vector<2x64xf32>
    %140 = math.exp %139 : vector<2x64xf32>
    %cst_43 = arith.constant 1.000000e+00 : f32
    %141 = vector.broadcast %cst_43 : f32 to vector<2x64xf32>
    %142 = arith.addf %141, %140 : vector<2x64xf32>
    %143 = arith.divf %141, %142 : vector<2x64xf32>
    %144 = vector.extract_strided_slice %143 {offsets = [0, 0], sizes = [2, 32], strides = [1, 1]} : vector<2x64xf32> to vector<2x32xf32>
    %145 = vector.extract_strided_slice %143 {offsets = [0, 32], sizes = [2, 32], strides = [1, 1]} : vector<2x64xf32> to vector<2x32xf32>
    %146 = vector.extract_strided_slice %134 {offsets = [0, 64], sizes = [2, 32], strides = [1, 1]} : vector<2x96xf32> to vector<2x32xf32>
    %147 = vector.extract_strided_slice %135 {offsets = [0, 64], sizes = [2, 32], strides = [1, 1]} : vector<2x96xf32> to vector<2x32xf32>
    %148 = arith.addf %147, %59 : vector<2x32xf32>
    %149 = arith.mulf %144, %148 : vector<2x32xf32>
    %150 = arith.addf %146, %149 : vector<2x32xf32>
    %151 = math.tanh %150 : vector<2x32xf32>
    %cst_44 = arith.constant 1.000000e+00 : f32
    %152 = vector.broadcast %cst_44 : f32 to vector<2x32xf32>
    %153 = arith.subf %152, %145 : vector<2x32xf32>
    %154 = arith.mulf %153, %151 : vector<2x32xf32>
    %155 = arith.mulf %145, %132 : vector<2x32xf32>
    %156 = arith.addf %154, %155 : vector<2x32xf32>
    %157 = vector.extract_strided_slice %55 {offsets = [4, 0, 0], sizes = [1, 2, 96], strides = [1, 1, 1]} : vector<8x2x96xf32> to vector<1x2x96xf32>
    %158 = vector.shape_cast %157 : vector<1x2x96xf32> to vector<2x96xf32>
    %cst_45 = arith.constant dense<0.000000e+00> : vector<2x96xf32>
    %159 = tpu.matmul %156, %56, %cst_45 {dimension_numbers = #tpu.dot_dimension_numbers<[1], [0], [0], [1], [0, 0, 1, 1], [], []>} : vector<2x32xf32>, vector<32x96xf32>, vector<2x96xf32> -> vector<2x96xf32>
    %160 = vector.extract_strided_slice %158 {offsets = [0, 0], sizes = [2, 64], strides = [1, 1]} : vector<2x96xf32> to vector<2x64xf32>
    %161 = vector.extract_strided_slice %159 {offsets = [0, 0], sizes = [2, 64], strides = [1, 1]} : vector<2x96xf32> to vector<2x64xf32>
    %162 = arith.addf %160, %161 : vector<2x64xf32>
    %163 = arith.negf %162 : vector<2x64xf32>
    %164 = math.exp %163 : vector<2x64xf32>
    %cst_46 = arith.constant 1.000000e+00 : f32
    %165 = vector.broadcast %cst_46 : f32 to vector<2x64xf32>
    %166 = arith.addf %165, %164 : vector<2x64xf32>
    %167 = arith.divf %165, %166 : vector<2x64xf32>
    %168 = vector.extract_strided_slice %167 {offsets = [0, 0], sizes = [2, 32], strides = [1, 1]} : vector<2x64xf32> to vector<2x32xf32>
    %169 = vector.extract_strided_slice %167 {offsets = [0, 32], sizes = [2, 32], strides = [1, 1]} : vector<2x64xf32> to vector<2x32xf32>
    %170 = vector.extract_strided_slice %158 {offsets = [0, 64], sizes = [2, 32], strides = [1, 1]} : vector<2x96xf32> to vector<2x32xf32>
    %171 = vector.extract_strided_slice %159 {offsets = [0, 64], sizes = [2, 32], strides = [1, 1]} : vector<2x96xf32> to vector<2x32xf32>
    %172 = arith.addf %171, %59 : vector<2x32xf32>
    %173 = arith.mulf %168, %172 : vector<2x32xf32>
    %174 = arith.addf %170, %173 : vector<2x32xf32>
    %175 = math.tanh %174 : vector<2x32xf32>
    %cst_47 = arith.constant 1.000000e+00 : f32
    %176 = vector.broadcast %cst_47 : f32 to vector<2x32xf32>
    %177 = arith.subf %176, %169 : vector<2x32xf32>
    %178 = arith.mulf %177, %175 : vector<2x32xf32>
    %179 = arith.mulf %169, %156 : vector<2x32xf32>
    %180 = arith.addf %178, %179 : vector<2x32xf32>
    %181 = vector.extract_strided_slice %55 {offsets = [5, 0, 0], sizes = [1, 2, 96], strides = [1, 1, 1]} : vector<8x2x96xf32> to vector<1x2x96xf32>
    %182 = vector.shape_cast %181 : vector<1x2x96xf32> to vector<2x96xf32>
    %cst_48 = arith.constant dense<0.000000e+00> : vector<2x96xf32>
    %183 = tpu.matmul %180, %56, %cst_48 {dimension_numbers = #tpu.dot_dimension_numbers<[1], [0], [0], [1], [0, 0, 1, 1], [], []>} : vector<2x32xf32>, vector<32x96xf32>, vector<2x96xf32> -> vector<2x96xf32>
    %184 = vector.extract_strided_slice %182 {offsets = [0, 0], sizes = [2, 64], strides = [1, 1]} : vector<2x96xf32> to vector<2x64xf32>
    %185 = vector.extract_strided_slice %183 {offsets = [0, 0], sizes = [2, 64], strides = [1, 1]} : vector<2x96xf32> to vector<2x64xf32>
    %186 = arith.addf %184, %185 : vector<2x64xf32>
    %187 = arith.negf %186 : vector<2x64xf32>
    %188 = math.exp %187 : vector<2x64xf32>
    %cst_49 = arith.constant 1.000000e+00 : f32
    %189 = vector.broadcast %cst_49 : f32 to vector<2x64xf32>
    %190 = arith.addf %189, %188 : vector<2x64xf32>
    %191 = arith.divf %189, %190 : vector<2x64xf32>
    %192 = vector.extract_strided_slice %191 {offsets = [0, 0], sizes = [2, 32], strides = [1, 1]} : vector<2x64xf32> to vector<2x32xf32>
    %193 = vector.extract_strided_slice %191 {offsets = [0, 32], sizes = [2, 32], strides = [1, 1]} : vector<2x64xf32> to vector<2x32xf32>
    %194 = vector.extract_strided_slice %182 {offsets = [0, 64], sizes = [2, 32], strides = [1, 1]} : vector<2x96xf32> to vector<2x32xf32>
    %195 = vector.extract_strided_slice %183 {offsets = [0, 64], sizes = [2, 32], strides = [1, 1]} : vector<2x96xf32> to vector<2x32xf32>
    %196 = arith.addf %195, %59 : vector<2x32xf32>
    %197 = arith.mulf %192, %196 : vector<2x32xf32>
    %198 = arith.addf %194, %197 : vector<2x32xf32>
    %199 = math.tanh %198 : vector<2x32xf32>
    %cst_50 = arith.constant 1.000000e+00 : f32
    %200 = vector.broadcast %cst_50 : f32 to vector<2x32xf32>
    %201 = arith.subf %200, %193 : vector<2x32xf32>
    %202 = arith.mulf %201, %199 : vector<2x32xf32>
    %203 = arith.mulf %193, %180 : vector<2x32xf32>
    %204 = arith.addf %202, %203 : vector<2x32xf32>
    %205 = vector.extract_strided_slice %55 {offsets = [6, 0, 0], sizes = [1, 2, 96], strides = [1, 1, 1]} : vector<8x2x96xf32> to vector<1x2x96xf32>
    %206 = vector.shape_cast %205 : vector<1x2x96xf32> to vector<2x96xf32>
    %cst_51 = arith.constant dense<0.000000e+00> : vector<2x96xf32>
    %207 = tpu.matmul %204, %56, %cst_51 {dimension_numbers = #tpu.dot_dimension_numbers<[1], [0], [0], [1], [0, 0, 1, 1], [], []>} : vector<2x32xf32>, vector<32x96xf32>, vector<2x96xf32> -> vector<2x96xf32>
    %208 = vector.extract_strided_slice %206 {offsets = [0, 0], sizes = [2, 64], strides = [1, 1]} : vector<2x96xf32> to vector<2x64xf32>
    %209 = vector.extract_strided_slice %207 {offsets = [0, 0], sizes = [2, 64], strides = [1, 1]} : vector<2x96xf32> to vector<2x64xf32>
    %210 = arith.addf %208, %209 : vector<2x64xf32>
    %211 = arith.negf %210 : vector<2x64xf32>
    %212 = math.exp %211 : vector<2x64xf32>
    %cst_52 = arith.constant 1.000000e+00 : f32
    %213 = vector.broadcast %cst_52 : f32 to vector<2x64xf32>
    %214 = arith.addf %213, %212 : vector<2x64xf32>
    %215 = arith.divf %213, %214 : vector<2x64xf32>
    %216 = vector.extract_strided_slice %215 {offsets = [0, 0], sizes = [2, 32], strides = [1, 1]} : vector<2x64xf32> to vector<2x32xf32>
    %217 = vector.extract_strided_slice %215 {offsets = [0, 32], sizes = [2, 32], strides = [1, 1]} : vector<2x64xf32> to vector<2x32xf32>
    %218 = vector.extract_strided_slice %206 {offsets = [0, 64], sizes = [2, 32], strides = [1, 1]} : vector<2x96xf32> to vector<2x32xf32>
    %219 = vector.extract_strided_slice %207 {offsets = [0, 64], sizes = [2, 32], strides = [1, 1]} : vector<2x96xf32> to vector<2x32xf32>
    %220 = arith.addf %219, %59 : vector<2x32xf32>
    %221 = arith.mulf %216, %220 : vector<2x32xf32>
    %222 = arith.addf %218, %221 : vector<2x32xf32>
    %223 = math.tanh %222 : vector<2x32xf32>
    %cst_53 = arith.constant 1.000000e+00 : f32
    %224 = vector.broadcast %cst_53 : f32 to vector<2x32xf32>
    %225 = arith.subf %224, %217 : vector<2x32xf32>
    %226 = arith.mulf %225, %223 : vector<2x32xf32>
    %227 = arith.mulf %217, %204 : vector<2x32xf32>
    %228 = arith.addf %226, %227 : vector<2x32xf32>
    %229 = vector.extract_strided_slice %55 {offsets = [7, 0, 0], sizes = [1, 2, 96], strides = [1, 1, 1]} : vector<8x2x96xf32> to vector<1x2x96xf32>
    %230 = vector.shape_cast %229 : vector<1x2x96xf32> to vector<2x96xf32>
    %cst_54 = arith.constant dense<0.000000e+00> : vector<2x96xf32>
    %231 = tpu.matmul %228, %56, %cst_54 {dimension_numbers = #tpu.dot_dimension_numbers<[1], [0], [0], [1], [0, 0, 1, 1], [], []>} : vector<2x32xf32>, vector<32x96xf32>, vector<2x96xf32> -> vector<2x96xf32>
    %232 = vector.extract_strided_slice %230 {offsets = [0, 0], sizes = [2, 64], strides = [1, 1]} : vector<2x96xf32> to vector<2x64xf32>
    %233 = vector.extract_strided_slice %231 {offsets = [0, 0], sizes = [2, 64], strides = [1, 1]} : vector<2x96xf32> to vector<2x64xf32>
    %234 = arith.addf %232, %233 : vector<2x64xf32>
    %235 = arith.negf %234 : vector<2x64xf32>
    %236 = math.exp %235 : vector<2x64xf32>
    %cst_55 = arith.constant 1.000000e+00 : f32
    %237 = vector.broadcast %cst_55 : f32 to vector<2x64xf32>
    %238 = arith.addf %237, %236 : vector<2x64xf32>
    %239 = arith.divf %237, %238 : vector<2x64xf32>
    %240 = vector.extract_strided_slice %239 {offsets = [0, 0], sizes = [2, 32], strides = [1, 1]} : vector<2x64xf32> to vector<2x32xf32>
    %241 = vector.extract_strided_slice %239 {offsets = [0, 32], sizes = [2, 32], strides = [1, 1]} : vector<2x64xf32> to vector<2x32xf32>
    %242 = vector.extract_strided_slice %230 {offsets = [0, 64], sizes = [2, 32], strides = [1, 1]} : vector<2x96xf32> to vector<2x32xf32>
    %243 = vector.extract_strided_slice %231 {offsets = [0, 64], sizes = [2, 32], strides = [1, 1]} : vector<2x96xf32> to vector<2x32xf32>
    %244 = arith.addf %243, %59 : vector<2x32xf32>
    %245 = arith.mulf %240, %244 : vector<2x32xf32>
    %246 = arith.addf %242, %245 : vector<2x32xf32>
    %247 = math.tanh %246 : vector<2x32xf32>
    %cst_56 = arith.constant 1.000000e+00 : f32
    %248 = vector.broadcast %cst_56 : f32 to vector<2x32xf32>
    %249 = arith.subf %248, %241 : vector<2x32xf32>
    %250 = arith.mulf %249, %247 : vector<2x32xf32>
    %251 = arith.mulf %241, %228 : vector<2x32xf32>
    %252 = arith.addf %250, %251 : vector<2x32xf32>
    %253 = vector.shape_cast %84 : vector<2x32xf32> to vector<2x1x32xf32>
    %254 = vector.shape_cast %108 : vector<2x32xf32> to vector<2x1x32xf32>
    %255 = vector.shape_cast %132 : vector<2x32xf32> to vector<2x1x32xf32>
    %256 = vector.shape_cast %156 : vector<2x32xf32> to vector<2x1x32xf32>
    %257 = vector.shape_cast %180 : vector<2x32xf32> to vector<2x1x32xf32>
    %258 = vector.shape_cast %204 : vector<2x32xf32> to vector<2x1x32xf32>
    %259 = vector.shape_cast %228 : vector<2x32xf32> to vector<2x1x32xf32>
    %260 = vector.shape_cast %252 : vector<2x32xf32> to vector<2x1x32xf32>
    %261 = tpu.concatenate %253, %254, %255, %256, %257, %258, %259, %260 in 1 : vector<2x1x32xf32>, vector<2x1x32xf32>, vector<2x1x32xf32>, vector<2x1x32xf32>, vector<2x1x32xf32>, vector<2x1x32xf32>, vector<2x1x32xf32>, vector<2x1x32xf32> -> vector<2x8x32xf32>
    %c0_57 = arith.constant 0 : index
    %c0_58 = arith.constant 0 : index
    %c0_59 = arith.constant 0 : index
    %262 = vector.load %arg8[%c0_57, %c0_58, %c0_59] : memref<2x8x32xf32, #tpu.memory_space<vmem>>, vector<2x8x32xf32>
    tpu.vector_store %arg8[%c0_57, %c0_58, %c0_59], %261 {strides = array<i32>} : memref<2x8x32xf32, #tpu.memory_space<vmem>>, vector<2x8x32xf32>,
    return
  }
  func.func @transform_0(%arg0: i32) -> (i32, i32, i32) {
    %c0_i32 = arith.constant 0 : i32
    %c0_i32_0 = arith.constant 0 : i32
    %c0_i32_1 = arith.constant 0 : i32
    return %c0_i32, %arg0, %c0_i32_0 : i32, i32, i32
  }
  func.func @transform_1(%arg0: i32) -> (i32, i32, i32) {
    %c0_i32 = arith.constant 0 : i32
    %c0_i32_0 = arith.constant 0 : i32
    %c0_i32_1 = arith.constant 0 : i32
    %c0_i32_2 = arith.constant 0 : i32
    return %c0_i32, %c0_i32_0, %c0_i32_1 : i32, i32, i32
  }
  func.func @transform_2(%arg0: i32) -> (i32, i32) {
    %c0_i32 = arith.constant 0 : i32
    %c0_i32_0 = arith.constant 0 : i32
    %c0_i32_1 = arith.constant 0 : i32
    return %c0_i32, %c0_i32_0 : i32, i32
  }
  func.func @transform_3(%arg0: i32) -> (i32, i32) {
    %c0_i32 = arith.constant 0 : i32
    %c0_i32_0 = arith.constant 0 : i32
    %c0_i32_1 = arith.constant 0 : i32
    return %c0_i32, %c0_i32_0 : i32, i32
  }
  func.func @transform_4(%arg0: i32) -> (i32, i32) {
    %c0_i32 = arith.constant 0 : i32
    %c0_i32_0 = arith.constant 0 : i32
    %c0_i32_1 = arith.constant 0 : i32
    return %c0_i32, %c0_i32_0 : i32, i32
  }
  func.func @transform_5(%arg0: i32) -> (i32, i32) {
    %c0_i32 = arith.constant 0 : i32
    %c0_i32_0 = arith.constant 0 : i32
    %c0_i32_1 = arith.constant 0 : i32
    return %c0_i32, %c0_i32_0 : i32, i32
  }
  func.func @transform_6(%arg0: i32) -> (i32, i32) {
    %c0_i32 = arith.constant 0 : i32
    %c0_i32_0 = arith.constant 0 : i32
    %c0_i32_1 = arith.constant 0 : i32
    return %c0_i32, %c0_i32_0 : i32, i32
  }
  func.func @transform_7(%arg0: i32) -> (i32, i32, i32) {
    %c0_i32 = arith.constant 0 : i32
    %c0_i32_0 = arith.constant 0 : i32
    %c0_i32_1 = arith.constant 0 : i32
    return %arg0, %c0_i32, %c0_i32_0 : i32, i32, i32
  }
}

</mosaic_0001>

<llo_original>
// kernel: tpu_custom_call.1
$region0: #{tpu_custom_call.1}
  #allocation0 [shape = 'u32[]', space=smem, size = 0x4, offset = 0x4, fixed_abs, tag = 'smem constant byte address 0x4 - core index']
  #allocation1 [shape = 'u32[144,128]{1,0:T(1,128)}', space=vmem, size = 0x12000, scoped, tag = 'internal scratch']
  %s0 = inlined_call_operand.vmem [shape: f32[20,2,13], index: 0, kind: input, shape index: {}]
  %s1 = inlined_call_operand.vmem [shape: bf16[6,13,64], index: 1, kind: input, shape index: {}]
  %s2 = inlined_call_operand.vmem [shape: f32[1,64], index: 2, kind: input, shape index: {}]
  %s3 = inlined_call_operand.hbm [shape: bf16[64,96], index: 3, kind: input, shape index: {}]
  %s4 = inlined_call_operand.vmem [shape: f32[1,96], index: 4, kind: input, shape index: {}]
  %s5 = inlined_call_operand.hbm [shape: f32[32,96], index: 5, kind: input, shape index: {}]
  %s6 = inlined_call_operand.vmem [shape: f32[1,32], index: 6, kind: input, shape index: {}]
  %s7 = inlined_call_operand.hbm [shape: f32[2,8,32], index: 7, kind: output, shape index: {}]
  %s8 = sld [smem:[#allocation0]]
  $region46: #{tpu_custom_call.1} parent=0
    _
  %s10 = ssub.s32 1, %s8
  %s11 = scalar_select 0, %s10, %s8
  $region1: #{tpu_custom_call.1} parent=0
    #allocation2 [shape = 'u8[16384]{0}', space=vmem, size = 0x4000, scoped, tag = 'input window, operand 3, single buffered']
    #allocation3 [shape = 's32[1]{0}', space=sflag, size = 0x4, scoped, tag = 'scoped memory for tpu_custom_call.1']
    #allocation4 [shape = 's32[1]{0}', space=sflag, size = 0x4, scoped, tag = 'scoped memory for tpu_custom_call.1']
    #allocation5 [shape = 'u8[16384]{0}', space=vmem, size = 0x4000, scoped, tag = 'input window, operand 5, single buffered']
    #allocation6 [shape = 's32[1]{0}', space=sflag, size = 0x4, scoped, tag = 'scoped memory for tpu_custom_call.1']
    #allocation7 [shape = 'u8[8192]{0}', space=vmem, size = 0x2000, scoped, tag = 'output window, operand 0, single buffered']
    %12 = vsyncpa [#allocation3], 0
    %13 = vsyncpa [#allocation6], 0
    %14 = vsyncpa [#allocation4], 0
    // Predicated region
    $region2: #{tpu_custom_call.1} parent=1 // pred_check
      _
    $region3: #{tpu_custom_call.1} parent=1 // pred_check_branch
      %16 = sbr.rel (0) target = $region5
    $region4: #{tpu_custom_call.1} parent=1 // pred_region
      _
    $region5: #{tpu_custom_call.1} parent=1 // pred_fallthru
      _
    // Predicated region
    $region6: #{tpu_custom_call.1} parent=1 // pred_check
      _
    $region7: #{tpu_custom_call.1} parent=1 // pred_check_branch
      %18 = sbr.rel (0) target = $region9
    $region8: #{tpu_custom_call.1} parent=1 // pred_region
      _
    $region9: #{tpu_custom_call.1} parent=1 // pred_fallthru
      _
    // Predicated region
    $region10: #{tpu_custom_call.1} parent=1 // pred_check
      _
    $region11: #{tpu_custom_call.1} parent=1 // pred_check_branch
      %20 = sbr.rel (0) target = $region13
    $region12: #{tpu_custom_call.1} parent=1 // pred_region
      _
    $region13: #{tpu_custom_call.1} parent=1 // pred_fallthru
      _
    // Predicated region
    $region14: #{tpu_custom_call.1} parent=1 // pred_check
      _
    $region15: #{tpu_custom_call.1} parent=1 // pred_check_branch
      %22 = sbr.rel (0) target = $region17
    $region16: #{tpu_custom_call.1} parent=1 // pred_region
      %s24 = ssub.s32 512, 512
      %25 = vsyncadd [#allocation3], %s24
      %s26 = sshll.u32 [#allocation2], 4
      %s27 = int_to_ptr.vmem [resolvable:$true] %s26
      %32 = dma.hbm_to_vmem [thread:$0]  %s3, 512, %s27, [#allocation3], 64, 64, 4
    $region17: #{tpu_custom_call.1} parent=1 // pred_fallthru
      _
    // Predicated region
    $region18: #{tpu_custom_call.1} parent=1 // pred_check
      _
    $region19: #{tpu_custom_call.1} parent=1 // pred_check_branch
      %34 = sbr.rel (0) target = $region21
    $region20: #{tpu_custom_call.1} parent=1 // pred_region
      _
    $region21: #{tpu_custom_call.1} parent=1 // pred_fallthru
      _
    // Predicated region
    $region22: #{tpu_custom_call.1} parent=1 // pred_check
      _
    $region23: #{tpu_custom_call.1} parent=1 // pred_check_branch
      %36 = sbr.rel (0) target = $region25
    $region24: #{tpu_custom_call.1} parent=1 // pred_region
      %s38 = ssub.s32 512, 512
      %39 = vsyncadd [#allocation6], %s38
      %s40 = sshll.u32 [#allocation5], 4
      %s41 = int_to_ptr.vmem [resolvable:$true] %s40
      %46 = dma.hbm_to_vmem [thread:$0]  %s5, 512, %s41, [#allocation6], 128, 128, 8
    $region25: #{tpu_custom_call.1} parent=1 // pred_fallthru
      _
    // Predicated region
    $region26: #{tpu_custom_call.1} parent=1 // pred_check
      _
    $region27: #{tpu_custom_call.1} parent=1 // pred_check_branch
      %48 = sbr.rel (0) target = $region29
    $region28: #{tpu_custom_call.1} parent=1 // pred_region
      _
    $region29: #{tpu_custom_call.1} parent=1 // pred_fallthru
      _
    // Predicated region
    $region30: #{tpu_custom_call.1} parent=1 // pred_check
      _
    $region31: #{tpu_custom_call.1} parent=1 // pred_check_branch
      %50 = sbr.rel (0) target = $region33
    $region32: #{tpu_custom_call.1} parent=1 // pred_region
      %51 = dma.done [#allocation3], 512
    $region33: #{tpu_custom_call.1} parent=1 // pred_fallthru
      _
    // Predicated region
    $region34: #{tpu_custom_call.1} parent=1 // pred_check
      _
    $region35: #{tpu_custom_call.1} parent=1 // pred_check_branch
      %53 = sbr.rel (0) target = $region37
    $region36: #{tpu_custom_call.1} parent=1 // pred_region
      %54 = dma.done [#allocation6], 512
    $region37: #{tpu_custom_call.1} parent=1 // pred_fallthru
      _
    %v56 = vld [vmem:[%s0] sm:$0x3]
    %v57 = vld [vmem:[%s0 + $0x2] sm:$0x3]
    %v58 = vld [vmem:[%s0 + $0x4] sm:$0x3]
    %v59 = vld [vmem:[%s0 + $0x6] sm:$0x3]
    %v60 = vld [vmem:[%s0 + $0x8] sm:$0x3]
    %v61 = vld [vmem:[%s0 + $0xa] sm:$0x3]
    %v62 = vld [vmem:[%s0 + $0xc] sm:$0x3]
    %v63 = vld [vmem:[%s0 + $0xe] sm:$0x3]
    %v64 = vld [vmem:[%s0 + $0x10] sm:$0x3]
    %v65 = vld [vmem:[%s0 + $0x12] sm:$0x3]
    %v66 = vld [vmem:[%s0 + $0x14] sm:$0x3]
    %v67 = vld [vmem:[%s0 + $0x16] sm:$0x3]
    %v68 = vld [vmem:[%s0 + $0x18] sm:$0x3]
    %v69 = vld [vmem:[%s0 + $0x1a] sm:$0x3]
    %v70 = vld [vmem:[%s0 + $0x1c] sm:$0x3]
    %v71 = vld [vmem:[%s0 + $0x1e] sm:$0x3]
    %v72 = vld [vmem:[%s0 + $0x20] sm:$0x3]
    %v73 = vld [vmem:[%s0 + $0x22] sm:$0x3]
    %v74 = vld [vmem:[%s0 + $0x24] sm:$0x3]
    %v75 = vld [vmem:[%s0 + $0x26] sm:$0x3]
    %v76 = vpack.c.bf16 %v56, %v56
    %v77 = vpack.c.bf16 %v57, %v57
    %v78 = vpack.c.bf16 %v58, %v58
    %v79 = vpack.c.bf16 %v59, %v59
    %v80 = vpack.c.bf16 %v60, %v60
    %v81 = vpack.c.bf16 %v61, %v61
    %v82 = vpack.c.bf16 %v62, %v62
    %v83 = vpack.c.bf16 %v63, %v63
    %v84 = vpack.c.bf16 %v64, %v64
    %v85 = vpack.c.bf16 %v65, %v65
    %v86 = vpack.c.bf16 %v66, %v66
    %v87 = vpack.c.bf16 %v67, %v67
    %v88 = vpack.c.bf16 %v68, %v68
    %v89 = vpack.c.bf16 %v69, %v69
    %v90 = vpack.c.bf16 %v70, %v70
    %v91 = vpack.c.bf16 %v71, %v71
    %v92 = vpack.c.bf16 %v72, %v72
    %v93 = vpack.c.bf16 %v73, %v73
    %v94 = vpack.c.bf16 %v74, %v74
    %v95 = vpack.c.bf16 %v75, %v75
    %v96 = vld [vmem:[%s1] sm:$0xf]
    %v97 = vld [vmem:[%s1 + $0x4] sm:$0x7]
    %s98 = scalar_lea.vmem %s1, 8
    %v99 = vld [vmem:[%s98] sm:$0xf]
    %v100 = vld [vmem:[%s98 + $0x4] sm:$0x7]
    %v109 = vcombine.low %v77, %v79
    %v110 = vcombine.low %v81, %v83
    %v111 = vcombine.low %v85, %v87
    %v112 = vcombine.low %v89, %v91
    %v114 = vunpack.c.l.s4 1966171168
    %v115 = vunpack.c.0.s8 %v114
    %v116 = vlaneseq
    %v117 = vshrl.u32 %v116, 7
    %v118 = vsub.s32 %v115, %v117
    %v119 = vrot.slane %v109, %v118
    %v121 = vunpack.c.l.s4 1966171168
    %v122 = vunpack.c.0.s8 %v121
    %v123 = vlaneseq
    %v124 = vshrl.u32 %v123, 7
    %v125 = vsub.s32 %v122, %v124
    %v126 = vrot.slane %v110, %v125
    %v128 = vunpack.c.l.s4 1966171168
    %v129 = vunpack.c.0.s8 %v128
    %v130 = vlaneseq
    %v131 = vshrl.u32 %v130, 7
    %v132 = vsub.s32 %v129, %v131
    %v133 = vrot.slane %v111, %v132
    %v135 = vunpack.c.l.s4 1966171168
    %v136 = vunpack.c.0.s8 %v135
    %v137 = vlaneseq
    %v138 = vshrl.u32 %v137, 7
    %v139 = vsub.s32 %v136, %v138
    %v140 = vrot.slane %v112, %v139
    %v141 = vcombine.low %v119, %v126
    %v142 = vcombine.low %v133, %v140
    %v144 = vunpack.c.l.s4 1966171168
    %v145 = vunpack.c.0.s8 %v144
    %v146 = vlaneseq
    %v147 = vshrl.u32 %v146, 7
    %v148 = vsub.s32 %v145, %v147
    %v149 = vrot.slane %v141, %v148
    %v151 = vunpack.c.l.s4 1966171168
    %v152 = vunpack.c.0.s8 %v151
    %v153 = vlaneseq
    %v154 = vshrl.u32 %v153, 7
    %v155 = vsub.s32 %v152, %v154
    %v156 = vrot.slane %v142, %v155
    %v157 = vcombine.low %v149, %v156
    %v160 = vunpack.c.l.b16 %v99
    %v161 = vunpack.c.l.b16 %v100
    %v162 = vpack.c.b16 %v161, %v160
    %vm163 = vcmask 105472
    %v165 = vsel %vm163, %v157, 0
    %vm167 = vcmask 1045504
    %vm168 = vcmask 1046528
    %v169 = vsel %vm167, 4294967295, 65535
    %v170 = vsel %vm168, %v169, 0
    %v172 = vand.u32 %v162, %v170
    %174 = vmatprep.subr.bf16.mxu0 0
    %175 = vmatpush1.bf16.msra.mxu0 0
    %176 = vmatprep.subr.bf16.mxu0 0
    %177 = vmatpush1.bf16.msra.mxu0 0
    %178 = vmatprep.subr.bf16.mxu0 0
    %179 = vmatpush1.bf16.msra.mxu0 0
    %180 = vmatprep.subr.bf16.mxu0 0
    %181 = vmatpush1.bf16.msra.mxu0 0
    %182 = vmatprep.subr.bf16.mxu0 0
    %183 = vmatpush1.bf16.msra.mxu0 0
    %184 = vmatprep.subr.bf16.mxu0 0
    %185 = vmatpush1.bf16.msra.mxu0 0
    %186 = vmatprep.subr.bf16.mxu0 0
    %187 = vmatpush1.bf16.msra.mxu0 0
    %188 = vmatprep.subr.bf16.mxu0 0
    %189 = vmatpush1.bf16.msra.mxu0 %v172
    %190 = vmatprep.subr.bf16.mxu0 0
    %191 = vmatpush2.bf16.msra.mxu0 0
    %192 = vmatprep.subr.bf16.mxu0 0
    %193 = vmatpush2.bf16.msra.mxu0 0
    %194 = vmatprep.subr.bf16.mxu0 0
    %195 = vmatpush2.bf16.msra.mxu0 0
    %196 = vmatprep.subr.bf16.mxu0 0
    %197 = vmatpush2.bf16.msra.mxu0 0
    %198 = vmatprep.subr.bf16.mxu0 0
    %199 = vmatpush2.bf16.msra.mxu0 0
    %200 = vmatprep.subr.bf16.mxu0 0
    %201 = vmatpush2.bf16.msra.mxu0 0
    %202 = vmatprep.subr.bf16.mxu0 0
    %203 = vmatpush2.bf16.msra.mxu0 0
    %204 = vmatprep.subr.bf16.mxu0 0
    %205 = vmatpush2.bf16.msra.mxu0 0
    %206 = vmatprep.mubr.bf16.mxu0 0
    %207 = vmatmul.mubr.bf16.gmra.mxu0 %v165
    %v208 = vpop.f32.mrf.mxu0
    %v209 = vadd.f32 0.0, %v208
    %v210 = vpop.f32.mrf.mxu0
    %v211 = vpop.f32.mrf.mxu0
    %v212 = vadd.f32 0.0, %v211
    %v213 = vpop.f32.mrf.mxu0
    %214 = vdwg.mxu0
    %v223 = vcombine.low %v76, %v78
    %v224 = vcombine.low %v80, %v82
    %v225 = vcombine.low %v84, %v86
    %v226 = vcombine.low %v88, %v90
    %v228 = vunpack.c.l.s4 1966171168
    %v229 = vunpack.c.0.s8 %v228
    %v230 = vlaneseq
    %v231 = vshrl.u32 %v230, 7
    %v232 = vsub.s32 %v229, %v231
    %v233 = vrot.slane %v223, %v232
    %v235 = vunpack.c.l.s4 1966171168
    %v236 = vunpack.c.0.s8 %v235
    %v237 = vlaneseq
    %v238 = vshrl.u32 %v237, 7
    %v239 = vsub.s32 %v236, %v238
    %v240 = vrot.slane %v224, %v239
    %v242 = vunpack.c.l.s4 1966171168
    %v243 = vunpack.c.0.s8 %v242
    %v244 = vlaneseq
    %v245 = vshrl.u32 %v244, 7
    %v246 = vsub.s32 %v243, %v245
    %v247 = vrot.slane %v225, %v246
    %v249 = vunpack.c.l.s4 1966171168
    %v250 = vunpack.c.0.s8 %v249
    %v251 = vlaneseq
    %v252 = vshrl.u32 %v251, 7
    %v253 = vsub.s32 %v250, %v252
    %v254 = vrot.slane %v226, %v253
    %v255 = vcombine.low %v233, %v240
    %v256 = vcombine.low %v247, %v254
    %v258 = vunpack.c.l.s4 1966171168
    %v259 = vunpack.c.0.s8 %v258
    %v260 = vlaneseq
    %v261 = vshrl.u32 %v260, 7
    %v262 = vsub.s32 %v259, %v261
    %v263 = vrot.slane %v255, %v262
    %v265 = vunpack.c.l.s4 1966171168
    %v266 = vunpack.c.0.s8 %v265
    %v267 = vlaneseq
    %v268 = vshrl.u32 %v267, 7
    %v269 = vsub.s32 %v266, %v268
    %v270 = vrot.slane %v256, %v269
    %v271 = vcombine.low %v263, %v270
    %v274 = vunpack.c.l.b16 %v96
    %v275 = vunpack.c.l.b16 %v97
    %v276 = vpack.c.b16 %v275, %v274
    %v278 = vsel %vm163, %v271, 0
    %v281 = vand.u32 %v276, %v170
    %283 = vmatprep.subr.bf16.mxu0 0
    %284 = vmatpush1.bf16.msra.mxu0 0
    %285 = vmatprep.subr.bf16.mxu0 0
    %286 = vmatpush1.bf16.msra.mxu0 0
    %287 = vmatprep.subr.bf16.mxu0 0
    %288 = vmatpush1.bf16.msra.mxu0 0
    %289 = vmatprep.subr.bf16.mxu0 0
    %290 = vmatpush1.bf16.msra.mxu0 0
    %291 = vmatprep.subr.bf16.mxu0 0
    %292 = vmatpush1.bf16.msra.mxu0 0
    %293 = vmatprep.subr.bf16.mxu0 0
    %294 = vmatpush1.bf16.msra.mxu0 0
    %295 = vmatprep.subr.bf16.mxu0 0
    %296 = vmatpush1.bf16.msra.mxu0 0
    %297 = vmatprep.subr.bf16.mxu0 0
    %298 = vmatpush1.bf16.msra.mxu0 %v281
    %299 = vmatprep.subr.bf16.mxu0 0
    %300 = vmatpush2.bf16.msra.mxu0 0
    %301 = vmatprep.subr.bf16.mxu0 0
    %302 = vmatpush2.bf16.msra.mxu0 0
    %303 = vmatprep.subr.bf16.mxu0 0
    %304 = vmatpush2.bf16.msra.mxu0 0
    %305 = vmatprep.subr.bf16.mxu0 0
    %306 = vmatpush2.bf16.msra.mxu0 0
    %307 = vmatprep.subr.bf16.mxu0 0
    %308 = vmatpush2.bf16.msra.mxu0 0
    %309 = vmatprep.subr.bf16.mxu0 0
    %310 = vmatpush2.bf16.msra.mxu0 0
    %311 = vmatprep.subr.bf16.mxu0 0
    %312 = vmatpush2.bf16.msra.mxu0 0
    %313 = vmatprep.subr.bf16.mxu0 0
    %314 = vmatpush2.bf16.msra.mxu0 0
    %315 = vmatprep.mubr.bf16.mxu0 0
    %316 = vmatmul.mubr.bf16.gmra.mxu0 %v278
    %v317 = vpop.f32.mrf.mxu0
    %v318 = vadd.f32 %v209, %v317
    %v319 = vpop.f32.mrf.mxu0
    %v320 = vpop.f32.mrf.mxu0
    %v321 = vadd.f32 %v212, %v320
    %v322 = vpop.f32.mrf.mxu0
    %323 = vdwg.mxu0
    %s324 = scalar_lea.vmem %s1, 16
    %v325 = vld [vmem:[%s324] sm:$0xf]
    %v326 = vld [vmem:[%s324 + $0x4] sm:$0x7]
    %v328 = vcombine.low %v78, %v80
    %v329 = vcombine.low %v82, %v84
    %v330 = vcombine.low %v86, %v88
    %v331 = vcombine.low %v90, %v92
    %v333 = vunpack.c.l.s4 1966171168
    %v334 = vunpack.c.0.s8 %v333
    %v335 = vlaneseq
    %v336 = vshrl.u32 %v335, 7
    %v337 = vsub.s32 %v334, %v336
    %v338 = vrot.slane %v328, %v337
    %v340 = vunpack.c.l.s4 1966171168
    %v341 = vunpack.c.0.s8 %v340
    %v342 = vlaneseq
    %v343 = vshrl.u32 %v342, 7
    %v344 = vsub.s32 %v341, %v343
    %v345 = vrot.slane %v329, %v344
    %v347 = vunpack.c.l.s4 1966171168
    %v348 = vunpack.c.0.s8 %v347
    %v349 = vlaneseq
    %v350 = vshrl.u32 %v349, 7
    %v351 = vsub.s32 %v348, %v350
    %v352 = vrot.slane %v330, %v351
    %v354 = vunpack.c.l.s4 1966171168
    %v355 = vunpack.c.0.s8 %v354
    %v356 = vlaneseq
    %v357 = vshrl.u32 %v356, 7
    %v358 = vsub.s32 %v355, %v357
    %v359 = vrot.slane %v331, %v358
    %v360 = vcombine.low %v338, %v345
    %v361 = vcombine.low %v352, %v359
    %v363 = vunpack.c.l.s4 1966171168
    %v364 = vunpack.c.0.s8 %v363
    %v365 = vlaneseq
    %v366 = vshrl.u32 %v365, 7
    %v367 = vsub.s32 %v364, %v366
    %v368 = vrot.slane %v360, %v367
    %v370 = vunpack.c.l.s4 1966171168
    %v371 = vunpack.c.0.s8 %v370
    %v372 = vlaneseq
    %v373 = vshrl.u32 %v372, 7
    %v374 = vsub.s32 %v371, %v373
    %v375 = vrot.slane %v361, %v374
    %v376 = vcombine.low %v368, %v375
    %v379 = vunpack.c.l.b16 %v325
    %v380 = vunpack.c.l.b16 %v326
    %v381 = vpack.c.b16 %v380, %v379
    %v383 = vsel %vm163, %v376, 0
    %v386 = vand.u32 %v381, %v170
    %388 = vmatprep.subr.bf16.mxu0 0
    %389 = vmatpush1.bf16.msra.mxu0 0
    %390 = vmatprep.subr.bf16.mxu0 0
    %391 = vmatpush1.bf16.msra.mxu0 0
    %392 = vmatprep.subr.bf16.mxu0 0
    %393 = vmatpush1.bf16.msra.mxu0 0
    %394 = vmatprep.subr.bf16.mxu0 0
    %395 = vmatpush1.bf16.msra.mxu0 0
    %396 = vmatprep.subr.bf16.mxu0 0
    %397 = vmatpush1.bf16.msra.mxu0 0
    %398 = vmatprep.subr.bf16.mxu0 0
    %399 = vmatpush1.bf16.msra.mxu0 0
    %400 = vmatprep.subr.bf16.mxu0 0
    %401 = vmatpush1.bf16.msra.mxu0 0
    %402 = vmatprep.subr.bf16.mxu0 0
    %403 = vmatpush1.bf16.msra.mxu0 %v386
    %404 = vmatprep.subr.bf16.mxu0 0
    %405 = vmatpush2.bf16.msra.mxu0 0
    %406 = vmatprep.subr.bf16.mxu0 0
    %407 = vmatpush2.bf16.msra.mxu0 0
    %408 = vmatprep.subr.bf16.mxu0 0
    %409 = vmatpush2.bf16.msra.mxu0 0
    %410 = vmatprep.subr.bf16.mxu0 0
    %411 = vmatpush2.bf16.msra.mxu0 0
    %412 = vmatprep.subr.bf16.mxu0 0
    %413 = vmatpush2.bf16.msra.mxu0 0
    %414 = vmatprep.subr.bf16.mxu0 0
    %415 = vmatpush2.bf16.msra.mxu0 0
    %416 = vmatprep.subr.bf16.mxu0 0
    %417 = vmatpush2.bf16.msra.mxu0 0
    %418 = vmatprep.subr.bf16.mxu0 0
    %419 = vmatpush2.bf16.msra.mxu0 0
    %420 = vmatprep.mubr.bf16.mxu0 0
    %421 = vmatmul.mubr.bf16.gmra.mxu0 %v383
    %v422 = vpop.f32.mrf.mxu0
    %v423 = vadd.f32 0.0, %v422
    %v424 = vpop.f32.mrf.mxu0
    %v425 = vpop.f32.mrf.mxu0
    %v426 = vadd.f32 0.0, %v425
    %v427 = vpop.f32.mrf.mxu0
    %428 = vdwg.mxu0
    %v429 = vadd.f32 %v318, %v423
    %v430 = vadd.f32 %v321, %v426
    %s431 = scalar_lea.vmem %s1, 24
    %v432 = vld [vmem:[%s431] sm:$0xf]
    %v433 = vld [vmem:[%s431 + $0x4] sm:$0x7]
    %v435 = vcombine.low %v79, %v81
    %v436 = vcombine.low %v83, %v85
    %v437 = vcombine.low %v87, %v89
    %v438 = vcombine.low %v91, %v93
    %v440 = vunpack.c.l.s4 1966171168
    %v441 = vunpack.c.0.s8 %v440
    %v442 = vlaneseq
    %v443 = vshrl.u32 %v442, 7
    %v444 = vsub.s32 %v441, %v443
    %v445 = vrot.slane %v435, %v444
    %v447 = vunpack.c.l.s4 1966171168
    %v448 = vunpack.c.0.s8 %v447
    %v449 = vlaneseq
    %v450 = vshrl.u32 %v449, 7
    %v451 = vsub.s32 %v448, %v450
    %v452 = vrot.slane %v436, %v451
    %v454 = vunpack.c.l.s4 1966171168
    %v455 = vunpack.c.0.s8 %v454
    %v456 = vlaneseq
    %v457 = vshrl.u32 %v456, 7
    %v458 = vsub.s32 %v455, %v457
    %v459 = vrot.slane %v437, %v458
    %v461 = vunpack.c.l.s4 1966171168
    %v462 = vunpack.c.0.s8 %v461
    %v463 = vlaneseq
    %v464 = vshrl.u32 %v463, 7
    %v465 = vsub.s32 %v462, %v464
    %v466 = vrot.slane %v438, %v465
    %v467 = vcombine.low %v445, %v452
    %v468 = vcombine.low %v459, %v466
    %v470 = vunpack.c.l.s4 1966171168
    %v471 = vunpack.c.0.s8 %v470
    %v472 = vlaneseq
    %v473 = vshrl.u32 %v472, 7
    %v474 = vsub.s32 %v471, %v473
    %v475 = vrot.slane %v467, %v474
    %v477 = vunpack.c.l.s4 1966171168
    %v478 = vunpack.c.0.s8 %v477
    %v479 = vlaneseq
    %v480 = vshrl.u32 %v479, 7
    %v481 = vsub.s32 %v478, %v480
    %v482 = vrot.slane %v468, %v481
    %v483 = vcombine.low %v475, %v482
    %v486 = vunpack.c.l.b16 %v432
    %v487 = vunpack.c.l.b16 %v433
    %v488 = vpack.c.b16 %v487, %v486
    %v490 = vsel %vm163, %v483, 0
    %v493 = vand.u32 %v488, %v170
    %495 = vmatprep.subr.bf16.mxu0 0
    %496 = vmatpush1.bf16.msra.mxu0 0
    %497 = vmatprep.subr.bf16.mxu0 0
    %498 = vmatpush1.bf16.msra.mxu0 0
    %499 = vmatprep.subr.bf16.mxu0 0
    %500 = vmatpush1.bf16.msra.mxu0 0
    %501 = vmatprep.subr.bf16.mxu0 0
    %502 = vmatpush1.bf16.msra.mxu0 0
    %503 = vmatprep.subr.bf16.mxu0 0
    %504 = vmatpush1.bf16.msra.mxu0 0
    %505 = vmatprep.subr.bf16.mxu0 0
    %506 = vmatpush1.bf16.msra.mxu0 0
    %507 = vmatprep.subr.bf16.mxu0 0
    %508 = vmatpush1.bf16.msra.mxu0 0
    %509 = vmatprep.subr.bf16.mxu0 0
    %510 = vmatpush1.bf16.msra.mxu0 %v493
    %511 = vmatprep.subr.bf16.mxu0 0
    %512 = vmatpush2.bf16.msra.mxu0 0
    %513 = vmatprep.subr.bf16.mxu0 0
    %514 = vmatpush2.bf16.msra.mxu0 0
    %515 = vmatprep.subr.bf16.mxu0 0
    %516 = vmatpush2.bf16.msra.mxu0 0
    %517 = vmatprep.subr.bf16.mxu0 0
    %518 = vmatpush2.bf16.msra.mxu0 0
    %519 = vmatprep.subr.bf16.mxu0 0
    %520 = vmatpush2.bf16.msra.mxu0 0
    %521 = vmatprep.subr.bf16.mxu0 0
    %522 = vmatpush2.bf16.msra.mxu0 0
    %523 = vmatprep.subr.bf16.mxu0 0
    %524 = vmatpush2.bf16.msra.mxu0 0
    %525 = vmatprep.subr.bf16.mxu0 0
    %526 = vmatpush2.bf16.msra.mxu0 0
    %527 = vmatprep.mubr.bf16.mxu0 0
    %528 = vmatmul.mubr.bf16.gmra.mxu0 %v490
    %v529 = vpop.f32.mrf.mxu0
    %v530 = vadd.f32 0.0, %v529
    %v531 = vpop.f32.mrf.mxu0
    %v532 = vpop.f32.mrf.mxu0
    %v533 = vadd.f32 0.0, %v532
    %v534 = vpop.f32.mrf.mxu0
    %535 = vdwg.mxu0
    %v536 = vadd.f32 %v429, %v530
    %v537 = vadd.f32 %v430, %v533
    %s538 = scalar_lea.vmem %s1, 32
    %v539 = vld [vmem:[%s538] sm:$0xf]
    %v540 = vld [vmem:[%s538 + $0x4] sm:$0x7]
    %v542 = vcombine.low %v92, %v94
    %v544 = vunpack.c.l.s4 1966171168
    %v545 = vunpack.c.0.s8 %v544
    %v546 = vlaneseq
    %v547 = vshrl.u32 %v546, 7
    %v548 = vsub.s32 %v545, %v547
    %v549 = vrot.slane %v542, %v548
    %v550 = vcombine.low %v240, %v247
    %v551 = vcombine.low %v254, %v549
    %v553 = vunpack.c.l.s4 1966171168
    %v554 = vunpack.c.0.s8 %v553
    %v555 = vlaneseq
    %v556 = vshrl.u32 %v555, 7
    %v557 = vsub.s32 %v554, %v556
    %v558 = vrot.slane %v550, %v557
    %v560 = vunpack.c.l.s4 1966171168
    %v561 = vunpack.c.0.s8 %v560
    %v562 = vlaneseq
    %v563 = vshrl.u32 %v562, 7
    %v564 = vsub.s32 %v561, %v563
    %v565 = vrot.slane %v551, %v564
    %v566 = vcombine.low %v558, %v565
    %v569 = vunpack.c.l.b16 %v539
    %v570 = vunpack.c.l.b16 %v540
    %v571 = vpack.c.b16 %v570, %v569
    %v573 = vsel %vm163, %v566, 0
    %v576 = vand.u32 %v571, %v170
    %578 = vmatprep.subr.bf16.mxu0 0
    %579 = vmatpush1.bf16.msra.mxu0 0
    %580 = vmatprep.subr.bf16.mxu0 0
    %581 = vmatpush1.bf16.msra.mxu0 0
    %582 = vmatprep.subr.bf16.mxu0 0
    %583 = vmatpush1.bf16.msra.mxu0 0
    %584 = vmatprep.subr.bf16.mxu0 0
    %585 = vmatpush1.bf16.msra.mxu0 0
    %586 = vmatprep.subr.bf16.mxu0 0
    %587 = vmatpush1.bf16.msra.mxu0 0
    %588 = vmatprep.subr.bf16.mxu0 0
    %589 = vmatpush1.bf16.msra.mxu0 0
    %590 = vmatprep.subr.bf16.mxu0 0
    %591 = vmatpush1.bf16.msra.mxu0 0
    %592 = vmatprep.subr.bf16.mxu0 0
    %593 = vmatpush1.bf16.msra.mxu0 %v576
    %594 = vmatprep.subr.bf16.mxu0 0
    %595 = vmatpush2.bf16.msra.mxu0 0
    %596 = vmatprep.subr.bf16.mxu0 0
    %597 = vmatpush2.bf16.msra.mxu0 0
    %598 = vmatprep.subr.bf16.mxu0 0
    %599 = vmatpush2.bf16.msra.mxu0 0
    %600 = vmatprep.subr.bf16.mxu0 0
    %601 = vmatpush2.bf16.msra.mxu0 0
    %602 = vmatprep.subr.bf16.mxu0 0
    %603 = vmatpush2.bf16.msra.mxu0 0
    %604 = vmatprep.subr.bf16.mxu0 0
    %605 = vmatpush2.bf16.msra.mxu0 0
    %606 = vmatprep.subr.bf16.mxu0 0
    %607 = vmatpush2.bf16.msra.mxu0 0
    %608 = vmatprep.subr.bf16.mxu0 0
    %609 = vmatpush2.bf16.msra.mxu0 0
    %610 = vmatprep.mubr.bf16.mxu0 0
    %611 = vmatmul.mubr.bf16.gmra.mxu0 %v573
    %v612 = vpop.f32.mrf.mxu0
    %v613 = vadd.f32 0.0, %v612
    %v614 = vpop.f32.mrf.mxu0
    %v615 = vpop.f32.mrf.mxu0
    %v616 = vadd.f32 0.0, %v615
    %v617 = vpop.f32.mrf.mxu0
    %618 = vdwg.mxu0
    %v619 = vadd.f32 %v536, %v613
    %v620 = vadd.f32 %v537, %v616
    %s621 = scalar_lea.vmem %s1, 40
    %v622 = vld [vmem:[%s621] sm:$0xf]
    %v623 = vld [vmem:[%s621 + $0x4] sm:$0x7]
    %v625 = vcombine.low %v93, %v95
    %v627 = vunpack.c.l.s4 1966171168
    %v628 = vunpack.c.0.s8 %v627
    %v629 = vlaneseq
    %v630 = vshrl.u32 %v629, 7
    %v631 = vsub.s32 %v628, %v630
    %v632 = vrot.slane %v625, %v631
    %v633 = vcombine.low %v126, %v133
    %v634 = vcombine.low %v140, %v632
    %v636 = vunpack.c.l.s4 1966171168
    %v637 = vunpack.c.0.s8 %v636
    %v638 = vlaneseq
    %v639 = vshrl.u32 %v638, 7
    %v640 = vsub.s32 %v637, %v639
    %v641 = vrot.slane %v633, %v640
    %v643 = vunpack.c.l.s4 1966171168
    %v644 = vunpack.c.0.s8 %v643
    %v645 = vlaneseq
    %v646 = vshrl.u32 %v645, 7
    %v647 = vsub.s32 %v644, %v646
    %v648 = vrot.slane %v634, %v647
    %v649 = vcombine.low %v641, %v648
    %v652 = vunpack.c.l.b16 %v622
    %v653 = vunpack.c.l.b16 %v623
    %v654 = vpack.c.b16 %v653, %v652
    %v656 = vsel %vm163, %v649, 0
    %v659 = vand.u32 %v654, %v170
    %661 = vmatprep.subr.bf16.mxu0 0
    %662 = vmatpush1.bf16.msra.mxu0 0
    %663 = vmatprep.subr.bf16.mxu0 0
    %664 = vmatpush1.bf16.msra.mxu0 0
    %665 = vmatprep.subr.bf16.mxu0 0
    %666 = vmatpush1.bf16.msra.mxu0 0
    %667 = vmatprep.subr.bf16.mxu0 0
    %668 = vmatpush1.bf16.msra.mxu0 0
    %669 = vmatprep.subr.bf16.mxu0 0
    %670 = vmatpush1.bf16.msra.mxu0 0
    %671 = vmatprep.subr.bf16.mxu0 0
    %672 = vmatpush1.bf16.msra.mxu0 0
    %673 = vmatprep.subr.bf16.mxu0 0
    %674 = vmatpush1.bf16.msra.mxu0 0
    %675 = vmatprep.subr.bf16.mxu0 0
    %676 = vmatpush1.bf16.msra.mxu0 %v659
    %677 = vmatprep.subr.bf16.mxu0 0
    %678 = vmatpush2.bf16.msra.mxu0 0
    %679 = vmatprep.subr.bf16.mxu0 0
    %680 = vmatpush2.bf16.msra.mxu0 0
    %681 = vmatprep.subr.bf16.mxu0 0
    %682 = vmatpush2.bf16.msra.mxu0 0
    %683 = vmatprep.subr.bf16.mxu0 0
    %684 = vmatpush2.bf16.msra.mxu0 0
    %685 = vmatprep.subr.bf16.mxu0 0
    %686 = vmatpush2.bf16.msra.mxu0 0
    %687 = vmatprep.subr.bf16.mxu0 0
    %688 = vmatpush2.bf16.msra.mxu0 0
    %689 = vmatprep.subr.bf16.mxu0 0
    %690 = vmatpush2.bf16.msra.mxu0 0
    %691 = vmatprep.subr.bf16.mxu0 0
    %692 = vmatpush2.bf16.msra.mxu0 0
    %693 = vmatprep.mubr.bf16.mxu0 0
    %694 = vmatmul.mubr.bf16.gmra.mxu0 %v656
    %v695 = vpop.f32.mrf.mxu0
    %v696 = vadd.f32 0.0, %v695
    %v697 = vpop.f32.mrf.mxu0
    %v698 = vpop.f32.mrf.mxu0
    %v699 = vadd.f32 0.0, %v698
    %v700 = vpop.f32.mrf.mxu0
    %701 = vdwg.mxu0
    %v702 = vadd.f32 %v619, %v696
    %v703 = vadd.f32 %v620, %v699
    %v704 = vld [vmem:[%s2] sm:$0x1]
    %v706 = vlaneseq
    %v707 = vshrl.u32 %v706, 7
    %v708 = vsub.s32 0, %v707
    %v709 = vrot.slane %v704, %v708
    %v711 = vadd.f32 %v702, %v709
    %v712 = vadd.f32 %v703, %v709
    %v713 = vpack.c.bf16 %v712, %v711
    %v714 = vld [vmem:[#allocation2] sm:$0xf]
    %v715 = vld [vmem:[#allocation2 + $0x4] sm:$0xf]
    %v716 = vld [vmem:[#allocation2 + $0x8] sm:$0xf]
    %v717 = vld [vmem:[#allocation2 + $0xc] sm:$0xf]
    %v718 = vld [vmem:[#allocation2 + $0x10] sm:$0xf]
    %v719 = vld [vmem:[#allocation2 + $0x14] sm:$0xf]
    %v720 = vld [vmem:[#allocation2 + $0x18] sm:$0xf]
    %v721 = vld [vmem:[#allocation2 + $0x1c] sm:$0xf]
    %v722 = vld [vmem:[%s4] sm:$0x1]
    %v724 = vlaneseq
    %v725 = vshrl.u32 %v724, 7
    %v726 = vsub.s32 0, %v725
    %v727 = vrot.slane %v722, %v726
    %v737 = vunpack.c.l.b16 %v714
    %v738 = vunpack.c.l.b16 %v715
    %v739 = vunpack.c.l.b16 %v716
    %v740 = vunpack.c.l.b16 %v717
    %v741 = vunpack.c.l.b16 %v718
    %v742 = vunpack.c.l.b16 %v719
    %v743 = vunpack.c.l.b16 %v720
    %v744 = vunpack.c.l.b16 %v721
    %v745 = vpack.c.b16 %v738, %v737
    %v746 = vpack.c.b16 %v740, %v739
    %v747 = vpack.c.b16 %v742, %v741
    %v748 = vpack.c.b16 %v744, %v743
    %vm753 = vcmask 523264
    %v755 = vsel %vm753, %v713, 0
    %757 = vmatprep.subr.bf16.mxu0 0
    %758 = vmatpush1.bf16.msra.mxu0 0
    %759 = vmatprep.subr.bf16.mxu0 0
    %760 = vmatpush1.bf16.msra.mxu0 0
    %761 = vmatprep.subr.bf16.mxu0 0
    %762 = vmatpush1.bf16.msra.mxu0 0
    %763 = vmatprep.subr.bf16.mxu0 0
    %764 = vmatpush1.bf16.msra.mxu0 0
    %765 = vmatprep.subr.bf16.mxu0 0
    %766 = vmatpush1.bf16.msra.mxu0 %v748
    %767 = vmatprep.subr.bf16.mxu0 0
    %768 = vmatpush1.bf16.msra.mxu0 %v747
    %769 = vmatprep.subr.bf16.mxu0 0
    %770 = vmatpush1.bf16.msra.mxu0 %v746
    %771 = vmatprep.subr.bf16.mxu0 0
    %772 = vmatpush1.bf16.msra.mxu0 %v745
    %773 = vmatprep.subr.bf16.mxu0 0
    %774 = vmatpush2.bf16.msra.mxu0 0
    %775 = vmatprep.subr.bf16.mxu0 0
    %776 = vmatpush2.bf16.msra.mxu0 0
    %777 = vmatprep.subr.bf16.mxu0 0
    %778 = vmatpush2.bf16.msra.mxu0 0
    %779 = vmatprep.subr.bf16.mxu0 0
    %780 = vmatpush2.bf16.msra.mxu0 0
    %781 = vmatprep.subr.bf16.mxu0 0
    %782 = vmatpush2.bf16.msra.mxu0 0
    %783 = vmatprep.subr.bf16.mxu0 0
    %784 = vmatpush2.bf16.msra.mxu0 0
    %785 = vmatprep.subr.bf16.mxu0 0
    %786 = vmatpush2.bf16.msra.mxu0 0
    %787 = vmatprep.subr.bf16.mxu0 0
    %788 = vmatpush2.bf16.msra.mxu0 0
    %789 = vmatprep.mubr.bf16.mxu0 0
    %790 = vmatmul.mubr.bf16.gmra.mxu0 %v755
    %v791 = vpop.f32.mrf.mxu0
    %v792 = vadd.f32 %v727, %v791
    %v793 = vpop.f32.mrf.mxu0
    %v794 = vpop.f32.mrf.mxu0
    %v795 = vadd.f32 %v727, %v794
    %v796 = vpop.f32.mrf.mxu0
    %797 = vdwg.mxu0
    %v800 = vcombine.high %v792, %v792
    %v802 = vunpack.c.l.s4 1983009808
    %v803 = vunpack.c.0.s8 %v802
    %v804 = vlaneseq
    %v805 = vshrl.u32 %v804, 7
    %v806 = vsub.s32 %v803, %v805
    %v807 = vrot.slane %v792, %v806
    %v809 = vunpack.c.l.s4 1983009808
    %v810 = vunpack.c.0.s8 %v809
    %v811 = vlaneseq
    %v812 = vshrl.u32 %v811, 7
    %v813 = vsub.s32 %v810, %v812
    %v814 = vrot.slane %v800, %v813
    %v815 = vcombine.high %v807, %v807
    %v816 = vcombine.high %v814, %v814
    %v817 = vcombine.high %v795, %v795
    %v819 = vunpack.c.l.s4 1983009808
    %v820 = vunpack.c.0.s8 %v819
    %v821 = vlaneseq
    %v822 = vshrl.u32 %v821, 7
    %v823 = vsub.s32 %v820, %v822
    %v824 = vrot.slane %v795, %v823
    %v826 = vunpack.c.l.s4 1983009808
    %v827 = vunpack.c.0.s8 %v826
    %v828 = vlaneseq
    %v829 = vshrl.u32 %v828, 7
    %v830 = vsub.s32 %v827, %v829
    %v831 = vrot.slane %v817, %v830
    %v832 = vcombine.high %v824, %v824
    %v833 = vcombine.high %v831, %v831
    %v842 = vld [vmem:[#allocation5] sm:$0xff]
    %v843 = vld [vmem:[#allocation5 + $0x8] sm:$0xff]
    %v844 = vld [vmem:[#allocation5 + $0x10] sm:$0xff]
    %v845 = vld [vmem:[#allocation5 + $0x18] sm:$0xff]
    %v846 = vld [vmem:[%s6] sm:$0x1]
    %v848 = vlaneseq
    %v849 = vshrl.u32 %v848, 7
    %v850 = vsub.s32 0, %v849
    %v851 = vrot.slane %v846, %v850
    %vm852 = vcmask 261120
    %v854 = vsel %vm852, 0.0, 0
    %856 = vmatprep.subr.mxu0 0.0
    %857 = vmatpush1.msra.mxu0 0.0
    %858 = vmatprep.subr.mxu0 0.0
    %859 = vmatpush1.msra.mxu0 0.0
    %860 = vmatprep.subr.mxu0 0.0
    %861 = vmatpush1.msra.mxu0 0.0
    %862 = vmatprep.subr.mxu0 0.0
    %863 = vmatpush1.msra.mxu0 0.0
    %864 = vmatprep.subr.mxu0 0.0
    %865 = vmatpush1.msra.mxu0 0.0
    %866 = vmatprep.subr.mxu0 0.0
    %867 = vmatpush1.msra.mxu0 0.0
    %868 = vmatprep.subr.mxu0 0.0
    %869 = vmatpush1.msra.mxu0 0.0
    %870 = vmatprep.subr.mxu0 0.0
    %871 = vmatpush1.msra.mxu0 0.0
    %872 = vmatprep.subr.mxu0 0.0
    %873 = vmatpush1.msra.mxu0 0.0
    %874 = vmatprep.subr.mxu0 0.0
    %875 = vmatpush1.msra.mxu0 0.0
    %876 = vmatprep.subr.mxu0 0.0
    %877 = vmatpush1.msra.mxu0 0.0
    %878 = vmatprep.subr.mxu0 0.0
    %879 = vmatpush1.msra.mxu0 0.0
    %880 = vmatprep.subr.mxu0 0.0
    %881 = vmatpush1.msra.mxu0 %v845
    %882 = vmatprep.subr.mxu0 0.0
    %883 = vmatpush1.msra.mxu0 %v844
    %884 = vmatprep.subr.mxu0 0.0
    %885 = vmatpush1.msra.mxu0 %v843
    %886 = vmatprep.subr.mxu0 0.0
    %887 = vmatpush1.msra.mxu0 %v842
    %888 = vmatprep.subr.mxu0 0.0
    %889 = vmatpush2.msra.mxu0 0.0
    %890 = vmatprep.subr.mxu0 0.0
    %891 = vmatpush2.msra.mxu0 0.0
    %892 = vmatprep.subr.mxu0 0.0
    %893 = vmatpush2.msra.mxu0 0.0
    %894 = vmatprep.subr.mxu0 0.0
    %895 = vmatpush2.msra.mxu0 0.0
    %896 = vmatprep.subr.mxu0 0.0
    %897 = vmatpush2.msra.mxu0 0.0
    %898 = vmatprep.subr.mxu0 0.0
    %899 = vmatpush2.msra.mxu0 0.0
    %900 = vmatprep.subr.mxu0 0.0
    %901 = vmatpush2.msra.mxu0 0.0
    %902 = vmatprep.subr.mxu0 0.0
    %903 = vmatpush2.msra.mxu0 0.0
    %904 = vmatprep.subr.mxu0 0.0
    %905 = vmatpush2.msra.mxu0 0.0
    %906 = vmatprep.subr.mxu0 0.0
    %907 = vmatpush2.msra.mxu0 0.0
    %908 = vmatprep.subr.mxu0 0.0
    %909 = vmatpush2.msra.mxu0 0.0
    %910 = vmatprep.subr.mxu0 0.0
    %911 = vmatpush2.msra.mxu0 0.0
    %912 = vmatprep.subr.mxu0 0.0
    %913 = vmatpush2.msra.mxu0 0.0
    %914 = vmatprep.subr.mxu0 0.0
    %915 = vmatpush2.msra.mxu0 0.0
    %916 = vmatprep.subr.mxu0 0.0
    %917 = vmatpush2.msra.mxu0 0.0
    %918 = vmatprep.subr.mxu0 0.0
    %919 = vmatpush2.msra.mxu0 0.0
    %920 = vmatprep.mubr.f32.mxu0 0.0
    %921 = vmatmul.mubr.f32.gmra.mxu0 %v854
    %v922 = vpop.f32.mrf.mxu0
    %v923 = vadd.f32 0.0, %v922
    %v924 = vpop.f32.mrf.mxu0
    %925 = vdwg.mxu0
    %v926 = vadd.f32 %v807, %v923
    %v927 = vxor.u32 %v926, 2147483648
    %v928 = vmul.f32 %v927, 1.442695
    %v929 = vpow.pop %v928
    %v930 = vadd.f32 %v929, 1.0
    %v931 = vrcp.pop %v930
    %v932 = vmul.f32 1.0, %v931
    %933 = vrot.lane.b32.xlu0 %v851, 64
    %v934 = vpop.permute.xlu0 %933
    %v936 = vadd.f32 %v923, %v934
    %v939 = vunpack.c.l.s4 1983009808
    %v940 = vunpack.c.0.s8 %v939
    %v941 = vlaneseq
    %v942 = vshrl.u32 %v941, 7
    %v943 = vsub.s32 %v940, %v942
    %v944 = vrot.slane %v936, %v943
    %945 = vrot.lane.b32.xlu0 %v944, 64
    %v946 = vpop.permute.xlu0 %945
    %v948 = vmul.f32 %v932, %v946
    %950 = vrot.lane.b32.xlu0 %v948, 64
    %v951 = vpop.permute.xlu0 %950
    %v953 = vadd.f32 %v807, %v951
    %v954 = vtanh.pop %v953
    %v955 = vsub.f32 1.0, %v932
    %957 = vrot.lane.b32.xlu0 %v954, 96
    %v958 = vpop.permute.xlu0 %957
    %v960 = vmul.f32 %v955, %v958
    %v961 = vmul.f32 %v932, 0.0
    %v962 = vadd.f32 %v960, %v961
    %v965 = vunpack.c.l.s4 1983009808
    %v966 = vunpack.c.0.s8 %v965
    %v967 = vlaneseq
    %v968 = vshrl.u32 %v967, 7
    %v969 = vsub.s32 %v966, %v968
    %v970 = vrot.slane %v962, %v969
    %971 = vrot.lane.b32.xlu0 %v970, 96
    %v972 = vpop.permute.xlu0 %971
    %v973 = vsel %vm852, %v972, 0
    %975 = vmatprep.subr.mxu0 0.0
    %976 = vmatpush1.msra.mxu0 0.0
    %977 = vmatprep.subr.mxu0 0.0
    %978 = vmatpush1.msra.mxu0 0.0
    %979 = vmatprep.subr.mxu0 0.0
    %980 = vmatpush1.msra.mxu0 0.0
    %981 = vmatprep.subr.mxu0 0.0
    %982 = vmatpush1.msra.mxu0 0.0
    %983 = vmatprep.subr.mxu0 0.0
    %984 = vmatpush1.msra.mxu0 0.0
    %985 = vmatprep.subr.mxu0 0.0
    %986 = vmatpush1.msra.mxu0 0.0
    %987 = vmatprep.subr.mxu0 0.0
    %988 = vmatpush1.msra.mxu0 0.0
    %989 = vmatprep.subr.mxu0 0.0
    %990 = vmatpush1.msra.mxu0 0.0
    %991 = vmatprep.subr.mxu0 0.0
    %992 = vmatpush1.msra.mxu0 0.0
    %993 = vmatprep.subr.mxu0 0.0
    %994 = vmatpush1.msra.mxu0 0.0
    %995 = vmatprep.subr.mxu0 0.0
    %996 = vmatpush1.msra.mxu0 0.0
    %997 = vmatprep.subr.mxu0 0.0
    %998 = vmatpush1.msra.mxu0 0.0
    %999 = vmatprep.subr.mxu0 0.0
    %1000 = vmatpush1.msra.mxu0 %v845
    %1001 = vmatprep.subr.mxu0 0.0
    %1002 = vmatpush1.msra.mxu0 %v844
    %1003 = vmatprep.subr.mxu0 0.0
    %1004 = vmatpush1.msra.mxu0 %v843
    %1005 = vmatprep.subr.mxu0 0.0
    %1006 = vmatpush1.msra.mxu0 %v842
    %1007 = vmatprep.subr.mxu0 0.0
    %1008 = vmatpush2.msra.mxu0 0.0
    %1009 = vmatprep.subr.mxu0 0.0
    %1010 = vmatpush2.msra.mxu0 0.0
    %1011 = vmatprep.subr.mxu0 0.0
    %1012 = vmatpush2.msra.mxu0 0.0
    %1013 = vmatprep.subr.mxu0 0.0
    %1014 = vmatpush2.msra.mxu0 0.0
    %1015 = vmatprep.subr.mxu0 0.0
    %1016 = vmatpush2.msra.mxu0 0.0
    %1017 = vmatprep.subr.mxu0 0.0
    %1018 = vmatpush2.msra.mxu0 0.0
    %1019 = vmatprep.subr.mxu0 0.0
    %1020 = vmatpush2.msra.mxu0 0.0
    %1021 = vmatprep.subr.mxu0 0.0
    %1022 = vmatpush2.msra.mxu0 0.0
    %1023 = vmatprep.subr.mxu0 0.0
    %1024 = vmatpush2.msra.mxu0 0.0
    %1025 = vmatprep.subr.mxu0 0.0
    %1026 = vmatpush2.msra.mxu0 0.0
    %1027 = vmatprep.subr.mxu0 0.0
    %1028 = vmatpush2.msra.mxu0 0.0
    %1029 = vmatprep.subr.mxu0 0.0
    %1030 = vmatpush2.msra.mxu0 0.0
    %1031 = vmatprep.subr.mxu0 0.0
    %1032 = vmatpush2.msra.mxu0 0.0
    %1033 = vmatprep.subr.mxu0 0.0
    %1034 = vmatpush2.msra.mxu0 0.0
    %1035 = vmatprep.subr.mxu0 0.0
    %1036 = vmatpush2.msra.mxu0 0.0
    %1037 = vmatprep.subr.mxu0 0.0
    %1038 = vmatpush2.msra.mxu0 0.0
    %1039 = vmatprep.mubr.f32.mxu0 0.0
    %1040 = vmatmul.mubr.f32.gmra.mxu0 %v973
    %v1041 = vpop.f32.mrf.mxu0
    %v1042 = vadd.f32 0.0, %v1041
    %v1043 = vpop.f32.mrf.mxu0
    %1044 = vdwg.mxu0
    %v1045 = vadd.f32 %v815, %v1042
    %v1046 = vxor.u32 %v1045, 2147483648
    %v1047 = vmul.f32 %v1046, 1.442695
    %v1048 = vpow.pop %v1047
    %v1049 = vadd.f32 %v1048, 1.0
    %v1050 = vrcp.pop %v1049
    %v1051 = vmul.f32 1.0, %v1050
    %v1052 = vadd.f32 %v1042, %v934
    %v1055 = vunpack.c.l.s4 1983009808
    %v1056 = vunpack.c.0.s8 %v1055
    %v1057 = vlaneseq
    %v1058 = vshrl.u32 %v1057, 7
    %v1059 = vsub.s32 %v1056, %v1058
    %v1060 = vrot.slane %v1052, %v1059
    %1061 = vrot.lane.b32.xlu0 %v1060, 64
    %v1062 = vpop.permute.xlu0 %1061
    %v1064 = vmul.f32 %v1051, %v1062
    %1066 = vrot.lane.b32.xlu0 %v1064, 64
    %v1067 = vpop.permute.xlu0 %1066
    %v1069 = vadd.f32 %v815, %v1067
    %v1070 = vtanh.pop %v1069
    %v1071 = vsub.f32 1.0, %v1051
    %1073 = vrot.lane.b32.xlu0 %v1070, 96
    %v1074 = vpop.permute.xlu0 %1073
    %v1076 = vmul.f32 %v1071, %v1074
    %v1077 = vmul.f32 %v1051, %v962
    %v1078 = vadd.f32 %v1076, %v1077
    %v1081 = vunpack.c.l.s4 1983009808
    %v1082 = vunpack.c.0.s8 %v1081
    %v1083 = vlaneseq
    %v1084 = vshrl.u32 %v1083, 7
    %v1085 = vsub.s32 %v1082, %v1084
    %v1086 = vrot.slane %v1078, %v1085
    %1087 = vrot.lane.b32.xlu0 %v1086, 96
    %v1088 = vpop.permute.xlu0 %1087
    %v1089 = vsel %vm852, %v1088, 0
    %1091 = vmatprep.subr.mxu0 0.0
    %1092 = vmatpush1.msra.mxu0 0.0
    %1093 = vmatprep.subr.mxu0 0.0
    %1094 = vmatpush1.msra.mxu0 0.0
    %1095 = vmatprep.subr.mxu0 0.0
    %1096 = vmatpush1.msra.mxu0 0.0
    %1097 = vmatprep.subr.mxu0 0.0
    %1098 = vmatpush1.msra.mxu0 0.0
    %1099 = vmatprep.subr.mxu0 0.0
    %1100 = vmatpush1.msra.mxu0 0.0
    %1101 = vmatprep.subr.mxu0 0.0
    %1102 = vmatpush1.msra.mxu0 0.0
    %1103 = vmatprep.subr.mxu0 0.0
    %1104 = vmatpush1.msra.mxu0 0.0
    %1105 = vmatprep.subr.mxu0 0.0
    %1106 = vmatpush1.msra.mxu0 0.0
    %1107 = vmatprep.subr.mxu0 0.0
    %1108 = vmatpush1.msra.mxu0 0.0
    %1109 = vmatprep.subr.mxu0 0.0
    %1110 = vmatpush1.msra.mxu0 0.0
    %1111 = vmatprep.subr.mxu0 0.0
    %1112 = vmatpush1.msra.mxu0 0.0
    %1113 = vmatprep.subr.mxu0 0.0
    %1114 = vmatpush1.msra.mxu0 0.0
    %1115 = vmatprep.subr.mxu0 0.0
    %1116 = vmatpush1.msra.mxu0 %v845
    %1117 = vmatprep.subr.mxu0 0.0
    %1118 = vmatpush1.msra.mxu0 %v844
    %1119 = vmatprep.subr.mxu0 0.0
    %1120 = vmatpush1.msra.mxu0 %v843
    %1121 = vmatprep.subr.mxu0 0.0
    %1122 = vmatpush1.msra.mxu0 %v842
    %1123 = vmatprep.subr.mxu0 0.0
    %1124 = vmatpush2.msra.mxu0 0.0
    %1125 = vmatprep.subr.mxu0 0.0
    %1126 = vmatpush2.msra.mxu0 0.0
    %1127 = vmatprep.subr.mxu0 0.0
    %1128 = vmatpush2.msra.mxu0 0.0
    %1129 = vmatprep.subr.mxu0 0.0
    %1130 = vmatpush2.msra.mxu0 0.0
    %1131 = vmatprep.subr.mxu0 0.0
    %1132 = vmatpush2.msra.mxu0 0.0
    %1133 = vmatprep.subr.mxu0 0.0
    %1134 = vmatpush2.msra.mxu0 0.0
    %1135 = vmatprep.subr.mxu0 0.0
    %1136 = vmatpush2.msra.mxu0 0.0
    %1137 = vmatprep.subr.mxu0 0.0
    %1138 = vmatpush2.msra.mxu0 0.0
    %1139 = vmatprep.subr.mxu0 0.0
    %1140 = vmatpush2.msra.mxu0 0.0
    %1141 = vmatprep.subr.mxu0 0.0
    %1142 = vmatpush2.msra.mxu0 0.0
    %1143 = vmatprep.subr.mxu0 0.0
    %1144 = vmatpush2.msra.mxu0 0.0
    %1145 = vmatprep.subr.mxu0 0.0
    %1146 = vmatpush2.msra.mxu0 0.0
    %1147 = vmatprep.subr.mxu0 0.0
    %1148 = vmatpush2.msra.mxu0 0.0
    %1149 = vmatprep.subr.mxu0 0.0
    %1150 = vmatpush2.msra.mxu0 0.0
    %1151 = vmatprep.subr.mxu0 0.0
    %1152 = vmatpush2.msra.mxu0 0.0
    %1153 = vmatprep.subr.mxu0 0.0
    %1154 = vmatpush2.msra.mxu0 0.0
    %1155 = vmatprep.mubr.f32.mxu0 0.0
    %1156 = vmatmul.mubr.f32.gmra.mxu0 %v1089
    %v1157 = vpop.f32.mrf.mxu0
    %v1158 = vadd.f32 0.0, %v1157
    %v1159 = vpop.f32.mrf.mxu0
    %1160 = vdwg.mxu0
    %v1161 = vadd.f32 %v814, %v1158
    %v1162 = vxor.u32 %v1161, 2147483648
    %v1163 = vmul.f32 %v1162, 1.442695
    %v1164 = vpow.pop %v1163
    %v1165 = vadd.f32 %v1164, 1.0
    %v1166 = vrcp.pop %v1165
    %v1167 = vmul.f32 1.0, %v1166
    %v1168 = vadd.f32 %v1158, %v934
    %v1171 = vunpack.c.l.s4 1983009808
    %v1172 = vunpack.c.0.s8 %v1171
    %v1173 = vlaneseq
    %v1174 = vshrl.u32 %v1173, 7
    %v1175 = vsub.s32 %v1172, %v1174
    %v1176 = vrot.slane %v1168, %v1175
    %1177 = vrot.lane.b32.xlu0 %v1176, 64
    %v1178 = vpop.permute.xlu0 %1177
    %v1180 = vmul.f32 %v1167, %v1178
    %1182 = vrot.lane.b32.xlu0 %v1180, 64
    %v1183 = vpop.permute.xlu0 %1182
    %v1185 = vadd.f32 %v814, %v1183
    %v1186 = vtanh.pop %v1185
    %v1187 = vsub.f32 1.0, %v1167
    %1189 = vrot.lane.b32.xlu0 %v1186, 96
    %v1190 = vpop.permute.xlu0 %1189
    %v1192 = vmul.f32 %v1187, %v1190
    %v1193 = vmul.f32 %v1167, %v1078
    %v1194 = vadd.f32 %v1192, %v1193
    %v1197 = vunpack.c.l.s4 1983009808
    %v1198 = vunpack.c.0.s8 %v1197
    %v1199 = vlaneseq
    %v1200 = vshrl.u32 %v1199, 7
    %v1201 = vsub.s32 %v1198, %v1200
    %v1202 = vrot.slane %v1194, %v1201
    %1203 = vrot.lane.b32.xlu0 %v1202, 96
    %v1204 = vpop.permute.xlu0 %1203
    %v1205 = vsel %vm852, %v1204, 0
    %1207 = vmatprep.subr.mxu0 0.0
    %1208 = vmatpush1.msra.mxu0 0.0
    %1209 = vmatprep.subr.mxu0 0.0
    %1210 = vmatpush1.msra.mxu0 0.0
    %1211 = vmatprep.subr.mxu0 0.0
    %1212 = vmatpush1.msra.mxu0 0.0
    %1213 = vmatprep.subr.mxu0 0.0
    %1214 = vmatpush1.msra.mxu0 0.0
    %1215 = vmatprep.subr.mxu0 0.0
    %1216 = vmatpush1.msra.mxu0 0.0
    %1217 = vmatprep.subr.mxu0 0.0
    %1218 = vmatpush1.msra.mxu0 0.0
    %1219 = vmatprep.subr.mxu0 0.0
    %1220 = vmatpush1.msra.mxu0 0.0
    %1221 = vmatprep.subr.mxu0 0.0
    %1222 = vmatpush1.msra.mxu0 0.0
    %1223 = vmatprep.subr.mxu0 0.0
    %1224 = vmatpush1.msra.mxu0 0.0
    %1225 = vmatprep.subr.mxu0 0.0
    %1226 = vmatpush1.msra.mxu0 0.0
    %1227 = vmatprep.subr.mxu0 0.0
    %1228 = vmatpush1.msra.mxu0 0.0
    %1229 = vmatprep.subr.mxu0 0.0
    %1230 = vmatpush1.msra.mxu0 0.0
    %1231 = vmatprep.subr.mxu0 0.0
    %1232 = vmatpush1.msra.mxu0 %v845
    %1233 = vmatprep.subr.mxu0 0.0
    %1234 = vmatpush1.msra.mxu0 %v844
    %1235 = vmatprep.subr.mxu0 0.0
    %1236 = vmatpush1.msra.mxu0 %v843
    %1237 = vmatprep.subr.mxu0 0.0
    %1238 = vmatpush1.msra.mxu0 %v842
    %1239 = vmatprep.subr.mxu0 0.0
    %1240 = vmatpush2.msra.mxu0 0.0
    %1241 = vmatprep.subr.mxu0 0.0
    %1242 = vmatpush2.msra.mxu0 0.0
    %1243 = vmatprep.subr.mxu0 0.0
    %1244 = vmatpush2.msra.mxu0 0.0
    %1245 = vmatprep.subr.mxu0 0.0
    %1246 = vmatpush2.msra.mxu0 0.0
    %1247 = vmatprep.subr.mxu0 0.0
    %1248 = vmatpush2.msra.mxu0 0.0
    %1249 = vmatprep.subr.mxu0 0.0
    %1250 = vmatpush2.msra.mxu0 0.0
    %1251 = vmatprep.subr.mxu0 0.0
    %1252 = vmatpush2.msra.mxu0 0.0
    %1253 = vmatprep.subr.mxu0 0.0
    %1254 = vmatpush2.msra.mxu0 0.0
    %1255 = vmatprep.subr.mxu0 0.0
    %1256 = vmatpush2.msra.mxu0 0.0
    %1257 = vmatprep.subr.mxu0 0.0
    %1258 = vmatpush2.msra.mxu0 0.0
    %1259 = vmatprep.subr.mxu0 0.0
    %1260 = vmatpush2.msra.mxu0 0.0
    %1261 = vmatprep.subr.mxu0 0.0
    %1262 = vmatpush2.msra.mxu0 0.0
    %1263 = vmatprep.subr.mxu0 0.0
    %1264 = vmatpush2.msra.mxu0 0.0
    %1265 = vmatprep.subr.mxu0 0.0
    %1266 = vmatpush2.msra.mxu0 0.0
    %1267 = vmatprep.subr.mxu0 0.0
    %1268 = vmatpush2.msra.mxu0 0.0
    %1269 = vmatprep.subr.mxu0 0.0
    %1270 = vmatpush2.msra.mxu0 0.0
    %1271 = vmatprep.mubr.f32.mxu0 0.0
    %1272 = vmatmul.mubr.f32.gmra.mxu0 %v1205
    %v1273 = vpop.f32.mrf.mxu0
    %v1274 = vadd.f32 0.0, %v1273
    %v1275 = vpop.f32.mrf.mxu0
    %1276 = vdwg.mxu0
    %v1277 = vadd.f32 %v816, %v1274
    %v1278 = vxor.u32 %v1277, 2147483648
    %v1279 = vmul.f32 %v1278, 1.442695
    %v1280 = vpow.pop %v1279
    %v1281 = vadd.f32 %v1280, 1.0
    %v1282 = vrcp.pop %v1281
    %v1283 = vmul.f32 1.0, %v1282
    %v1284 = vadd.f32 %v1274, %v934
    %v1287 = vunpack.c.l.s4 1983009808
    %v1288 = vunpack.c.0.s8 %v1287
    %v1289 = vlaneseq
    %v1290 = vshrl.u32 %v1289, 7
    %v1291 = vsub.s32 %v1288, %v1290
    %v1292 = vrot.slane %v1284, %v1291
    %1293 = vrot.lane.b32.xlu0 %v1292, 64
    %v1294 = vpop.permute.xlu0 %1293
    %v1296 = vmul.f32 %v1283, %v1294
    %1298 = vrot.lane.b32.xlu0 %v1296, 64
    %v1299 = vpop.permute.xlu0 %1298
    %v1301 = vadd.f32 %v816, %v1299
    %v1302 = vtanh.pop %v1301
    %v1303 = vsub.f32 1.0, %v1283
    %1305 = vrot.lane.b32.xlu0 %v1302, 96
    %v1306 = vpop.permute.xlu0 %1305
    %v1308 = vmul.f32 %v1303, %v1306
    %v1309 = vmul.f32 %v1283, %v1194
    %v1310 = vadd.f32 %v1308, %v1309
    %v1313 = vunpack.c.l.s4 1983009808
    %v1314 = vunpack.c.0.s8 %v1313
    %v1315 = vlaneseq
    %v1316 = vshrl.u32 %v1315, 7
    %v1317 = vsub.s32 %v1314, %v1316
    %v1318 = vrot.slane %v1310, %v1317
    %1319 = vrot.lane.b32.xlu0 %v1318, 96
    %v1320 = vpop.permute.xlu0 %1319
    %v1321 = vsel %vm852, %v1320, 0
    %1323 = vmatprep.subr.mxu0 0.0
    %1324 = vmatpush1.msra.mxu0 0.0
    %1325 = vmatprep.subr.mxu0 0.0
    %1326 = vmatpush1.msra.mxu0 0.0
    %1327 = vmatprep.subr.mxu0 0.0
    %1328 = vmatpush1.msra.mxu0 0.0
    %1329 = vmatprep.subr.mxu0 0.0
    %1330 = vmatpush1.msra.mxu0 0.0
    %1331 = vmatprep.subr.mxu0 0.0
    %1332 = vmatpush1.msra.mxu0 0.0
    %1333 = vmatprep.subr.mxu0 0.0
    %1334 = vmatpush1.msra.mxu0 0.0
    %1335 = vmatprep.subr.mxu0 0.0
    %1336 = vmatpush1.msra.mxu0 0.0
    %1337 = vmatprep.subr.mxu0 0.0
    %1338 = vmatpush1.msra.mxu0 0.0
    %1339 = vmatprep.subr.mxu0 0.0
    %1340 = vmatpush1.msra.mxu0 0.0
    %1341 = vmatprep.subr.mxu0 0.0
    %1342 = vmatpush1.msra.mxu0 0.0
    %1343 = vmatprep.subr.mxu0 0.0
    %1344 = vmatpush1.msra.mxu0 0.0
    %1345 = vmatprep.subr.mxu0 0.0
    %1346 = vmatpush1.msra.mxu0 0.0
    %1347 = vmatprep.subr.mxu0 0.0
    %1348 = vmatpush1.msra.mxu0 %v845
    %1349 = vmatprep.subr.mxu0 0.0
    %1350 = vmatpush1.msra.mxu0 %v844
    %1351 = vmatprep.subr.mxu0 0.0
    %1352 = vmatpush1.msra.mxu0 %v843
    %1353 = vmatprep.subr.mxu0 0.0
    %1354 = vmatpush1.msra.mxu0 %v842
    %1355 = vmatprep.subr.mxu0 0.0
    %1356 = vmatpush2.msra.mxu0 0.0
    %1357 = vmatprep.subr.mxu0 0.0
    %1358 = vmatpush2.msra.mxu0 0.0
    %1359 = vmatprep.subr.mxu0 0.0
    %1360 = vmatpush2.msra.mxu0 0.0
    %1361 = vmatprep.subr.mxu0 0.0
    %1362 = vmatpush2.msra.mxu0 0.0
    %1363 = vmatprep.subr.mxu0 0.0
    %1364 = vmatpush2.msra.mxu0 0.0
    %1365 = vmatprep.subr.mxu0 0.0
    %1366 = vmatpush2.msra.mxu0 0.0
    %1367 = vmatprep.subr.mxu0 0.0
    %1368 = vmatpush2.msra.mxu0 0.0
    %1369 = vmatprep.subr.mxu0 0.0
    %1370 = vmatpush2.msra.mxu0 0.0
    %1371 = vmatprep.subr.mxu0 0.0
    %1372 = vmatpush2.msra.mxu0 0.0
    %1373 = vmatprep.subr.mxu0 0.0
    %1374 = vmatpush2.msra.mxu0 0.0
    %1375 = vmatprep.subr.mxu0 0.0
    %1376 = vmatpush2.msra.mxu0 0.0
    %1377 = vmatprep.subr.mxu0 0.0
    %1378 = vmatpush2.msra.mxu0 0.0
    %1379 = vmatprep.subr.mxu0 0.0
    %1380 = vmatpush2.msra.mxu0 0.0
    %1381 = vmatprep.subr.mxu0 0.0
    %1382 = vmatpush2.msra.mxu0 0.0
    %1383 = vmatprep.subr.mxu0 0.0
    %1384 = vmatpush2.msra.mxu0 0.0
    %1385 = vmatprep.subr.mxu0 0.0
    %1386 = vmatpush2.msra.mxu0 0.0
    %1387 = vmatprep.mubr.f32.mxu0 0.0
    %1388 = vmatmul.mubr.f32.gmra.mxu0 %v1321
    %v1389 = vpop.f32.mrf.mxu0
    %v1390 = vadd.f32 0.0, %v1389
    %v1391 = vpop.f32.mrf.mxu0
    %1392 = vdwg.mxu0
    %v1393 = vadd.f32 %v824, %v1390
    %v1394 = vxor.u32 %v1393, 2147483648
    %v1395 = vmul.f32 %v1394, 1.442695
    %v1396 = vpow.pop %v1395
    %v1397 = vadd.f32 %v1396, 1.0
    %v1398 = vrcp.pop %v1397
    %v1399 = vmul.f32 1.0, %v1398
    %v1400 = vadd.f32 %v1390, %v934
    %v1403 = vunpack.c.l.s4 1983009808
    %v1404 = vunpack.c.0.s8 %v1403
    %v1405 = vlaneseq
    %v1406 = vshrl.u32 %v1405, 7
    %v1407 = vsub.s32 %v1404, %v1406
    %v1408 = vrot.slane %v1400, %v1407
    %1409 = vrot.lane.b32.xlu0 %v1408, 64
    %v1410 = vpop.permute.xlu0 %1409
    %v1412 = vmul.f32 %v1399, %v1410
    %1414 = vrot.lane.b32.xlu0 %v1412, 64
    %v1415 = vpop.permute.xlu0 %1414
    %v1417 = vadd.f32 %v824, %v1415
    %v1418 = vtanh.pop %v1417
    %v1419 = vsub.f32 1.0, %v1399
    %1421 = vrot.lane.b32.xlu0 %v1418, 96
    %v1422 = vpop.permute.xlu0 %1421
    %v1424 = vmul.f32 %v1419, %v1422
    %v1425 = vmul.f32 %v1399, %v1310
    %v1426 = vadd.f32 %v1424, %v1425
    %v1429 = vunpack.c.l.s4 1983009808
    %v1430 = vunpack.c.0.s8 %v1429
    %v1431 = vlaneseq
    %v1432 = vshrl.u32 %v1431, 7
    %v1433 = vsub.s32 %v1430, %v1432
    %v1434 = vrot.slane %v1426, %v1433
    %1435 = vrot.lane.b32.xlu0 %v1434, 96
    %v1436 = vpop.permute.xlu0 %1435
    %v1437 = vsel %vm852, %v1436, 0
    %1439 = vmatprep.subr.mxu0 0.0
    %1440 = vmatpush1.msra.mxu0 0.0
    %1441 = vmatprep.subr.mxu0 0.0
    %1442 = vmatpush1.msra.mxu0 0.0
    %1443 = vmatprep.subr.mxu0 0.0
    %1444 = vmatpush1.msra.mxu0 0.0
    %1445 = vmatprep.subr.mxu0 0.0
    %1446 = vmatpush1.msra.mxu0 0.0
    %1447 = vmatprep.subr.mxu0 0.0
    %1448 = vmatpush1.msra.mxu0 0.0
    %1449 = vmatprep.subr.mxu0 0.0
    %1450 = vmatpush1.msra.mxu0 0.0
    %1451 = vmatprep.subr.mxu0 0.0
    %1452 = vmatpush1.msra.mxu0 0.0
    %1453 = vmatprep.subr.mxu0 0.0
    %1454 = vmatpush1.msra.mxu0 0.0
    %1455 = vmatprep.subr.mxu0 0.0
    %1456 = vmatpush1.msra.mxu0 0.0
    %1457 = vmatprep.subr.mxu0 0.0
    %1458 = vmatpush1.msra.mxu0 0.0
    %1459 = vmatprep.subr.mxu0 0.0
    %1460 = vmatpush1.msra.mxu0 0.0
    %1461 = vmatprep.subr.mxu0 0.0
    %1462 = vmatpush1.msra.mxu0 0.0
    %1463 = vmatprep.subr.mxu0 0.0
    %1464 = vmatpush1.msra.mxu0 %v845
    %1465 = vmatprep.subr.mxu0 0.0
    %1466 = vmatpush1.msra.mxu0 %v844
    %1467 = vmatprep.subr.mxu0 0.0
    %1468 = vmatpush1.msra.mxu0 %v843
    %1469 = vmatprep.subr.mxu0 0.0
    %1470 = vmatpush1.msra.mxu0 %v842
    %1471 = vmatprep.subr.mxu0 0.0
    %1472 = vmatpush2.msra.mxu0 0.0
    %1473 = vmatprep.subr.mxu0 0.0
    %1474 = vmatpush2.msra.mxu0 0.0
    %1475 = vmatprep.subr.mxu0 0.0
    %1476 = vmatpush2.msra.mxu0 0.0
    %1477 = vmatprep.subr.mxu0 0.0
    %1478 = vmatpush2.msra.mxu0 0.0
    %1479 = vmatprep.subr.mxu0 0.0
    %1480 = vmatpush2.msra.mxu0 0.0
    %1481 = vmatprep.subr.mxu0 0.0
    %1482 = vmatpush2.msra.mxu0 0.0
    %1483 = vmatprep.subr.mxu0 0.0
    %1484 = vmatpush2.msra.mxu0 0.0
    %1485 = vmatprep.subr.mxu0 0.0
    %1486 = vmatpush2.msra.mxu0 0.0
    %1487 = vmatprep.subr.mxu0 0.0
    %1488 = vmatpush2.msra.mxu0 0.0
    %1489 = vmatprep.subr.mxu0 0.0
    %1490 = vmatpush2.msra.mxu0 0.0
    %1491 = vmatprep.subr.mxu0 0.0
    %1492 = vmatpush2.msra.mxu0 0.0
    %1493 = vmatprep.subr.mxu0 0.0
    %1494 = vmatpush2.msra.mxu0 0.0
    %1495 = vmatprep.subr.mxu0 0.0
    %1496 = vmatpush2.msra.mxu0 0.0
    %1497 = vmatprep.subr.mxu0 0.0
    %1498 = vmatpush2.msra.mxu0 0.0
    %1499 = vmatprep.subr.mxu0 0.0
    %1500 = vmatpush2.msra.mxu0 0.0
    %1501 = vmatprep.subr.mxu0 0.0
    %1502 = vmatpush2.msra.mxu0 0.0
    %1503 = vmatprep.mubr.f32.mxu0 0.0
    %1504 = vmatmul.mubr.f32.gmra.mxu0 %v1437
    %v1505 = vpop.f32.mrf.mxu0
    %v1506 = vadd.f32 0.0, %v1505
    %v1507 = vpop.f32.mrf.mxu0
    %1508 = vdwg.mxu0
    %v1509 = vadd.f32 %v832, %v1506
    %v1510 = vxor.u32 %v1509, 2147483648
    %v1511 = vmul.f32 %v1510, 1.442695
    %v1512 = vpow.pop %v1511
    %v1513 = vadd.f32 %v1512, 1.0
    %v1514 = vrcp.pop %v1513
    %v1515 = vmul.f32 1.0, %v1514
    %v1516 = vadd.f32 %v1506, %v934
    %v1519 = vunpack.c.l.s4 1983009808
    %v1520 = vunpack.c.0.s8 %v1519
    %v1521 = vlaneseq
    %v1522 = vshrl.u32 %v1521, 7
    %v1523 = vsub.s32 %v1520, %v1522
    %v1524 = vrot.slane %v1516, %v1523
    %1525 = vrot.lane.b32.xlu0 %v1524, 64
    %v1526 = vpop.permute.xlu0 %1525
    %v1528 = vmul.f32 %v1515, %v1526
    %1530 = vrot.lane.b32.xlu0 %v1528, 64
    %v1531 = vpop.permute.xlu0 %1530
    %v1533 = vadd.f32 %v832, %v1531
    %v1534 = vtanh.pop %v1533
    %v1535 = vsub.f32 1.0, %v1515
    %1537 = vrot.lane.b32.xlu0 %v1534, 96
    %v1538 = vpop.permute.xlu0 %1537
    %v1540 = vmul.f32 %v1535, %v1538
    %v1541 = vmul.f32 %v1515, %v1426
    %v1542 = vadd.f32 %v1540, %v1541
    %v1545 = vunpack.c.l.s4 1983009808
    %v1546 = vunpack.c.0.s8 %v1545
    %v1547 = vlaneseq
    %v1548 = vshrl.u32 %v1547, 7
    %v1549 = vsub.s32 %v1546, %v1548
    %v1550 = vrot.slane %v1542, %v1549
    %1551 = vrot.lane.b32.xlu0 %v1550, 96
    %v1552 = vpop.permute.xlu0 %1551
    %v1553 = vsel %vm852, %v1552, 0
    %1555 = vmatprep.subr.mxu0 0.0
    %1556 = vmatpush1.msra.mxu0 0.0
    %1557 = vmatprep.subr.mxu0 0.0
    %1558 = vmatpush1.msra.mxu0 0.0
    %1559 = vmatprep.subr.mxu0 0.0
    %1560 = vmatpush1.msra.mxu0 0.0
    %1561 = vmatprep.subr.mxu0 0.0
    %1562 = vmatpush1.msra.mxu0 0.0
    %1563 = vmatprep.subr.mxu0 0.0
    %1564 = vmatpush1.msra.mxu0 0.0
    %1565 = vmatprep.subr.mxu0 0.0
    %1566 = vmatpush1.msra.mxu0 0.0
    %1567 = vmatprep.subr.mxu0 0.0
    %1568 = vmatpush1.msra.mxu0 0.0
    %1569 = vmatprep.subr.mxu0 0.0
    %1570 = vmatpush1.msra.mxu0 0.0
    %1571 = vmatprep.subr.mxu0 0.0
    %1572 = vmatpush1.msra.mxu0 0.0
    %1573 = vmatprep.subr.mxu0 0.0
    %1574 = vmatpush1.msra.mxu0 0.0
    %1575 = vmatprep.subr.mxu0 0.0
    %1576 = vmatpush1.msra.mxu0 0.0
    %1577 = vmatprep.subr.mxu0 0.0
    %1578 = vmatpush1.msra.mxu0 0.0
    %1579 = vmatprep.subr.mxu0 0.0
    %1580 = vmatpush1.msra.mxu0 %v845
    %1581 = vmatprep.subr.mxu0 0.0
    %1582 = vmatpush1.msra.mxu0 %v844
    %1583 = vmatprep.subr.mxu0 0.0
    %1584 = vmatpush1.msra.mxu0 %v843
    %1585 = vmatprep.subr.mxu0 0.0
    %1586 = vmatpush1.msra.mxu0 %v842
    %1587 = vmatprep.subr.mxu0 0.0
    %1588 = vmatpush2.msra.mxu0 0.0
    %1589 = vmatprep.subr.mxu0 0.0
    %1590 = vmatpush2.msra.mxu0 0.0
    %1591 = vmatprep.subr.mxu0 0.0
    %1592 = vmatpush2.msra.mxu0 0.0
    %1593 = vmatprep.subr.mxu0 0.0
    %1594 = vmatpush2.msra.mxu0 0.0
    %1595 = vmatprep.subr.mxu0 0.0
    %1596 = vmatpush2.msra.mxu0 0.0
    %1597 = vmatprep.subr.mxu0 0.0
    %1598 = vmatpush2.msra.mxu0 0.0
    %1599 = vmatprep.subr.mxu0 0.0
    %1600 = vmatpush2.msra.mxu0 0.0
    %1601 = vmatprep.subr.mxu0 0.0
    %1602 = vmatpush2.msra.mxu0 0.0
    %1603 = vmatprep.subr.mxu0 0.0
    %1604 = vmatpush2.msra.mxu0 0.0
    %1605 = vmatprep.subr.mxu0 0.0
    %1606 = vmatpush2.msra.mxu0 0.0
    %1607 = vmatprep.subr.mxu0 0.0
    %1608 = vmatpush2.msra.mxu0 0.0
    %1609 = vmatprep.subr.mxu0 0.0
    %1610 = vmatpush2.msra.mxu0 0.0
    %1611 = vmatprep.subr.mxu0 0.0
    %1612 = vmatpush2.msra.mxu0 0.0
    %1613 = vmatprep.subr.mxu0 0.0
    %1614 = vmatpush2.msra.mxu0 0.0
    %1615 = vmatprep.subr.mxu0 0.0
    %1616 = vmatpush2.msra.mxu0 0.0
    %1617 = vmatprep.subr.mxu0 0.0
    %1618 = vmatpush2.msra.mxu0 0.0
    %1619 = vmatprep.mubr.f32.mxu0 0.0
    %1620 = vmatmul.mubr.f32.gmra.mxu0 %v1553
    %v1621 = vpop.f32.mrf.mxu0
    %v1622 = vadd.f32 0.0, %v1621
    %v1623 = vpop.f32.mrf.mxu0
    %1624 = vdwg.mxu0
    %v1625 = vadd.f32 %v831, %v1622
    %v1626 = vxor.u32 %v1625, 2147483648
    %v1627 = vmul.f32 %v1626, 1.442695
    %v1628 = vpow.pop %v1627
    %v1629 = vadd.f32 %v1628, 1.0
    %v1630 = vrcp.pop %v1629
    %v1631 = vmul.f32 1.0, %v1630
    %v1632 = vadd.f32 %v1622, %v934
    %v1635 = vunpack.c.l.s4 1983009808
    %v1636 = vunpack.c.0.s8 %v1635
    %v1637 = vlaneseq
    %v1638 = vshrl.u32 %v1637, 7
    %v1639 = vsub.s32 %v1636, %v1638
    %v1640 = vrot.slane %v1632, %v1639
    %1641 = vrot.lane.b32.xlu0 %v1640, 64
    %v1642 = vpop.permute.xlu0 %1641
    %v1644 = vmul.f32 %v1631, %v1642
    %1646 = vrot.lane.b32.xlu0 %v1644, 64
    %v1647 = vpop.permute.xlu0 %1646
    %v1649 = vadd.f32 %v831, %v1647
    %v1650 = vtanh.pop %v1649
    %v1651 = vsub.f32 1.0, %v1631
    %1653 = vrot.lane.b32.xlu0 %v1650, 96
    %v1654 = vpop.permute.xlu0 %1653
    %v1656 = vmul.f32 %v1651, %v1654
    %v1657 = vmul.f32 %v1631, %v1542
    %v1658 = vadd.f32 %v1656, %v1657
    %v1661 = vunpack.c.l.s4 1983009808
    %v1662 = vunpack.c.0.s8 %v1661
    %v1663 = vlaneseq
    %v1664 = vshrl.u32 %v1663, 7
    %v1665 = vsub.s32 %v1662, %v1664
    %v1666 = vrot.slane %v1658, %v1665
    %1667 = vrot.lane.b32.xlu0 %v1666, 96
    %v1668 = vpop.permute.xlu0 %1667
    %v1669 = vsel %vm852, %v1668, 0
    %1671 = vmatprep.subr.mxu0 0.0
    %1672 = vmatpush1.msra.mxu0 0.0
    %1673 = vmatprep.subr.mxu0 0.0
    %1674 = vmatpush1.msra.mxu0 0.0
    %1675 = vmatprep.subr.mxu0 0.0
    %1676 = vmatpush1.msra.mxu0 0.0
    %1677 = vmatprep.subr.mxu0 0.0
    %1678 = vmatpush1.msra.mxu0 0.0
    %1679 = vmatprep.subr.mxu0 0.0
    %1680 = vmatpush1.msra.mxu0 0.0
    %1681 = vmatprep.subr.mxu0 0.0
    %1682 = vmatpush1.msra.mxu0 0.0
    %1683 = vmatprep.subr.mxu0 0.0
    %1684 = vmatpush1.msra.mxu0 0.0
    %1685 = vmatprep.subr.mxu0 0.0
    %1686 = vmatpush1.msra.mxu0 0.0
    %1687 = vmatprep.subr.mxu0 0.0
    %1688 = vmatpush1.msra.mxu0 0.0
    %1689 = vmatprep.subr.mxu0 0.0
    %1690 = vmatpush1.msra.mxu0 0.0
    %1691 = vmatprep.subr.mxu0 0.0
    %1692 = vmatpush1.msra.mxu0 0.0
    %1693 = vmatprep.subr.mxu0 0.0
    %1694 = vmatpush1.msra.mxu0 0.0
    %1695 = vmatprep.subr.mxu0 0.0
    %1696 = vmatpush1.msra.mxu0 %v845
    %1697 = vmatprep.subr.mxu0 0.0
    %1698 = vmatpush1.msra.mxu0 %v844
    %1699 = vmatprep.subr.mxu0 0.0
    %1700 = vmatpush1.msra.mxu0 %v843
    %1701 = vmatprep.subr.mxu0 0.0
    %1702 = vmatpush1.msra.mxu0 %v842
    %1703 = vmatprep.subr.mxu0 0.0
    %1704 = vmatpush2.msra.mxu0 0.0
    %1705 = vmatprep.subr.mxu0 0.0
    %1706 = vmatpush2.msra.mxu0 0.0
    %1707 = vmatprep.subr.mxu0 0.0
    %1708 = vmatpush2.msra.mxu0 0.0
    %1709 = vmatprep.subr.mxu0 0.0
    %1710 = vmatpush2.msra.mxu0 0.0
    %1711 = vmatprep.subr.mxu0 0.0
    %1712 = vmatpush2.msra.mxu0 0.0
    %1713 = vmatprep.subr.mxu0 0.0
    %1714 = vmatpush2.msra.mxu0 0.0
    %1715 = vmatprep.subr.mxu0 0.0
    %1716 = vmatpush2.msra.mxu0 0.0
    %1717 = vmatprep.subr.mxu0 0.0
    %1718 = vmatpush2.msra.mxu0 0.0
    %1719 = vmatprep.subr.mxu0 0.0
    %1720 = vmatpush2.msra.mxu0 0.0
    %1721 = vmatprep.subr.mxu0 0.0
    %1722 = vmatpush2.msra.mxu0 0.0
    %1723 = vmatprep.subr.mxu0 0.0
    %1724 = vmatpush2.msra.mxu0 0.0
    %1725 = vmatprep.subr.mxu0 0.0
    %1726 = vmatpush2.msra.mxu0 0.0
    %1727 = vmatprep.subr.mxu0 0.0
    %1728 = vmatpush2.msra.mxu0 0.0
    %1729 = vmatprep.subr.mxu0 0.0
    %1730 = vmatpush2.msra.mxu0 0.0
    %1731 = vmatprep.subr.mxu0 0.0
    %1732 = vmatpush2.msra.mxu0 0.0
    %1733 = vmatprep.subr.mxu0 0.0
    %1734 = vmatpush2.msra.mxu0 0.0
    %1735 = vmatprep.mubr.f32.mxu0 0.0
    %1736 = vmatmul.mubr.f32.gmra.mxu0 %v1669
    %v1737 = vpop.f32.mrf.mxu0
    %v1738 = vadd.f32 0.0, %v1737
    %v1739 = vpop.f32.mrf.mxu0
    %1740 = vdwg.mxu0
    %v1741 = vadd.f32 %v833, %v1738
    %v1742 = vxor.u32 %v1741, 2147483648
    %v1743 = vmul.f32 %v1742, 1.442695
    %v1744 = vpow.pop %v1743
    %v1745 = vadd.f32 %v1744, 1.0
    %v1746 = vrcp.pop %v1745
    %v1747 = vmul.f32 1.0, %v1746
    %v1748 = vadd.f32 %v1738, %v934
    %v1751 = vunpack.c.l.s4 1983009808
    %v1752 = vunpack.c.0.s8 %v1751
    %v1753 = vlaneseq
    %v1754 = vshrl.u32 %v1753, 7
    %v1755 = vsub.s32 %v1752, %v1754
    %v1756 = vrot.slane %v1748, %v1755
    %1757 = vrot.lane.b32.xlu0 %v1756, 64
    %v1758 = vpop.permute.xlu0 %1757
    %v1760 = vmul.f32 %v1747, %v1758
    %1762 = vrot.lane.b32.xlu0 %v1760, 64
    %v1763 = vpop.permute.xlu0 %1762
    %v1765 = vadd.f32 %v833, %v1763
    %v1766 = vtanh.pop %v1765
    %v1767 = vsub.f32 1.0, %v1747
    %1769 = vrot.lane.b32.xlu0 %v1766, 96
    %v1770 = vpop.permute.xlu0 %1769
    %v1772 = vmul.f32 %v1767, %v1770
    %v1773 = vmul.f32 %v1747, %v1658
    %v1774 = vadd.f32 %v1772, %v1773
    %v1776 = vunpack.c.l.s4 1966171168
    %v1777 = vunpack.c.0.s8 %v1776
    %v1778 = vlaneseq
    %v1779 = vshrl.u32 %v1778, 7
    %v1780 = vsub.s32 %v1777, %v1779
    %v1781 = vrot.slane %v962, %v1780
    %v1782 = vcombine.high %v1781, %v1781
    %v1786 = vunpack.c.l.s4 1966171168
    %v1787 = vunpack.c.0.s8 %v1786
    %v1788 = vlaneseq
    %v1789 = vshrl.u32 %v1788, 7
    %v1790 = vsub.s32 %v1787, %v1789
    %v1791 = vrot.slane %v1078, %v1790
    %v1792 = vcombine.high %v1791, %v1791
    %v1794 = vunpack.c.l.s4 1966171168
    %v1795 = vunpack.c.0.s8 %v1794
    %v1796 = vlaneseq
    %v1797 = vshrl.u32 %v1796, 7
    %v1798 = vsub.s32 %v1795, %v1797
    %v1799 = vrot.slane %v1194, %v1798
    %v1800 = vcombine.high %v1799, %v1799
    %v1802 = vunpack.c.l.s4 1966171168
    %v1803 = vunpack.c.0.s8 %v1802
    %v1804 = vlaneseq
    %v1805 = vshrl.u32 %v1804, 7
    %v1806 = vsub.s32 %v1803, %v1805
    %v1807 = vrot.slane %v1310, %v1806
    %v1808 = vcombine.high %v1807, %v1807
    %v1810 = vunpack.c.l.s4 1966171168
    %v1811 = vunpack.c.0.s8 %v1810
    %v1812 = vlaneseq
    %v1813 = vshrl.u32 %v1812, 7
    %v1814 = vsub.s32 %v1811, %v1813
    %v1815 = vrot.slane %v1426, %v1814
    %v1816 = vcombine.high %v1815, %v1815
    %v1818 = vunpack.c.l.s4 1966171168
    %v1819 = vunpack.c.0.s8 %v1818
    %v1820 = vlaneseq
    %v1821 = vshrl.u32 %v1820, 7
    %v1822 = vsub.s32 %v1819, %v1821
    %v1823 = vrot.slane %v1542, %v1822
    %v1824 = vcombine.high %v1823, %v1823
    %v1826 = vunpack.c.l.s4 1966171168
    %v1827 = vunpack.c.0.s8 %v1826
    %v1828 = vlaneseq
    %v1829 = vshrl.u32 %v1828, 7
    %v1830 = vsub.s32 %v1827, %v1829
    %v1831 = vrot.slane %v1658, %v1830
    %v1832 = vcombine.high %v1831, %v1831
    %v1835 = vunpack.c.l.s4 1966171168
    %v1836 = vunpack.c.0.s8 %v1835
    %v1837 = vlaneseq
    %v1838 = vshrl.u32 %v1837, 7
    %v1839 = vsub.s32 %v1836, %v1838
    %v1840 = vrot.slane %v1774, %v1839
    %v1841 = vcombine.high %v1840, %v1840
    %v1842 = vlaneseq
    %v1843 = vshrl.u32 %v1842, 7
    %v1844 = vsub.s32 0, %v1843
    %v1845 = vrot.slane %v1791, %v1844
    %v1846 = vlaneseq
    %v1847 = vshrl.u32 %v1846, 7
    %v1848 = vsub.s32 0, %v1847
    %v1849 = vrot.slane %v1792, %v1848
    %v1852 = vlaneseq
    %v1853 = vshrl.u32 %v1852, 7
    %v1854 = vsub.s32 0, %v1853
    %v1855 = vrot.slane %v1799, %v1854
    %v1856 = vlaneseq
    %v1857 = vshrl.u32 %v1856, 7
    %v1858 = vsub.s32 0, %v1857
    %v1859 = vrot.slane %v1800, %v1858
    %v1862 = vlaneseq
    %v1863 = vshrl.u32 %v1862, 7
    %v1864 = vsub.s32 0, %v1863
    %v1865 = vrot.slane %v1807, %v1864
    %v1866 = vlaneseq
    %v1867 = vshrl.u32 %v1866, 7
    %v1868 = vsub.s32 0, %v1867
    %v1869 = vrot.slane %v1808, %v1868
    %v1872 = vlaneseq
    %v1873 = vshrl.u32 %v1872, 7
    %v1874 = vsub.s32 0, %v1873
    %v1875 = vrot.slane %v1815, %v1874
    %v1876 = vlaneseq
    %v1877 = vshrl.u32 %v1876, 7
    %v1878 = vsub.s32 0, %v1877
    %v1879 = vrot.slane %v1816, %v1878
    %v1882 = vlaneseq
    %v1883 = vshrl.u32 %v1882, 7
    %v1884 = vsub.s32 0, %v1883
    %v1885 = vrot.slane %v1823, %v1884
    %v1886 = vlaneseq
    %v1887 = vshrl.u32 %v1886, 7
    %v1888 = vsub.s32 0, %v1887
    %v1889 = vrot.slane %v1824, %v1888
    %v1892 = vlaneseq
    %v1893 = vshrl.u32 %v1892, 7
    %v1894 = vsub.s32 0, %v1893
    %v1895 = vrot.slane %v1831, %v1894
    %v1896 = vlaneseq
    %v1897 = vshrl.u32 %v1896, 7
    %v1898 = vsub.s32 0, %v1897
    %v1899 = vrot.slane %v1832, %v1898
    %v1902 = vlaneseq
    %v1903 = vshrl.u32 %v1902, 7
    %v1904 = vsub.s32 0, %v1903
    %v1905 = vrot.slane %v1840, %v1904
    %v1906 = vlaneseq
    %v1907 = vshrl.u32 %v1906, 7
    %v1908 = vsub.s32 0, %v1907
    %v1909 = vrot.slane %v1841, %v1908
    %vm1912 = vcmask 1040384
    %v1913 = vsel %vm1912, %v1781, %v1845
    %v1914 = vsel %vm1912, %v1782, %v1849
    %vm1915 = vcmask 1041408
    %v1916 = vsel %vm1915, %v1913, %v1855
    %v1917 = vsel %vm1915, %v1914, %v1859
    %vm1918 = vcmask 1042432
    %v1919 = vsel %vm1918, %v1916, %v1865
    %v1920 = vsel %vm1918, %v1917, %v1869
    %vm1921 = vcmask 1043456
    %v1922 = vsel %vm1921, %v1919, %v1875
    %v1923 = vsel %vm1921, %v1920, %v1879
    %vm1924 = vcmask 1044480
    %v1925 = vsel %vm1924, %v1922, %v1885
    %v1926 = vsel %vm1924, %v1923, %v1889
    %v1927 = vsel %vm167, %v1925, %v1895
    %v1928 = vsel %vm167, %v1926, %v1899
    %v1929 = vsel %vm168, %v1927, %v1905
    %v1930 = vsel %vm168, %v1928, %v1909
    %1933 = vrot.lane.b32.xlu0 %v1929, 96
    %v1934 = vpop.permute.xlu0 %1933
    %1935 = vrot.lane.b32.xlu0 %v1930, 96
    %v1936 = vpop.permute.xlu0 %1935
    %1939 = vst.msk [vmem:[#allocation7] sm:$0xff] %vm852, %v1934
    %1940 = vst.msk [vmem:[#allocation7 + $0x8] sm:$0xff] %vm852, %v1936
    // Predicated region
    $region38: #{tpu_custom_call.1} parent=1 // pred_check
      _
    $region39: #{tpu_custom_call.1} parent=1 // pred_check_branch
      %1942 = sbr.rel (0) target = $region41
    $region40: #{tpu_custom_call.1} parent=1 // pred_region
      %s1944 = ssub.s32 256, 256
      %1945 = vsyncadd [#allocation4], %s1944
      %s1946 = sshll.u32 [#allocation7], 4
      %s1947 = int_to_ptr.vmem [resolvable:$true] %s1946
      %1952 = dma.vmem_to_hbm [thread:$0]  %s1947, 256, %s7, [#allocation4], 128, 128, 8
    $region41: #{tpu_custom_call.1} parent=1 // pred_fallthru
      _
    // Predicated region
    $region42: #{tpu_custom_call.1} parent=1 // pred_check
      _
    $region43: #{tpu_custom_call.1} parent=1 // pred_check_branch
      %1954 = sbr.rel (0) target = $region45
    $region44: #{tpu_custom_call.1} parent=1 // pred_region
      %1955 = dma.done [#allocation4], 256
    $region45: #{tpu_custom_call.1} parent=1 // pred_fallthru
      _
    %1956 = vsyncpa [#allocation3], 1
    %1957 = vsyncpa [#allocation6], 1
    %1958 = vsyncpa [#allocation4], 1

</llo_original>
